<compile_context>
chip_gen: v7x
topology: tpu7x:2x2x1
jax: 0.10.0
libtpu: 0.0.40
codegen_flags: <defaults>
</compile_context>

<pallas_src>
import functools

import jax
import jax.numpy as jnp
from jax import lax
from jax.experimental import pallas as pl
from jax.experimental.pallas import tpu as pltpu

_BIG = 1e30  # Python float (a jnp scalar here caused the captured-constant error)


def _stretch_kernel(qr_ref, dbr_ref, sqr_ref, qp_ref, dbp_ref, sqp_ref, o_ref,
                    *, nn_size, tq, n, mode):
    """One (query-tile, batch) grid step.

    qr_ref : (1, TQ, C) ref points, this tile (knn queries / matmul LHS)
    dbr_ref: (1, C,  N) ref points, transposed DB (lane-dense matmul RHS)
    sqr_ref: (1, 1,  N) ||ref||^2, precomputed in the wrapper
    qp_ref : (1, TQ, C) pred points, this tile
    dbp_ref: (1, C,  N) pred points, transposed DB
    sqp_ref: (1, 1,  N) ||pred||^2, precomputed
    o_ref  : (1, 1, TQ)  per-point sum/max over K   (mode 'sum' / 'max')
             (1, K, TQ)  per-(point, k) stretch     (mode 'none')
    """
    qi = pl.program_id(0)

    q_r = qr_ref[0].astype(jnp.float32)     # (TQ, C)
    db_r = dbr_ref[0].astype(jnp.float32)   # (C, N)
    sq_r = sqr_ref[0].astype(jnp.float32)   # (1, N)
    q_p = qp_ref[0].astype(jnp.float32)
    db_p = dbp_ref[0].astype(jnp.float32)
    sq_p = sqp_ref[0].astype(jnp.float32)

    # Pairwise squared distances on the MXU: ||q||^2 + ||p||^2 - 2 q.p
    # (expanded form; see module notes on cancellation for near-coincident points)
    qq_r = jnp.sum(q_r * q_r, axis=-1, keepdims=True)   # (TQ, 1)
    qq_p = jnp.sum(q_p * q_p, axis=-1, keepdims=True)
    d2_r = qq_r + sq_r - 2.0 * jnp.dot(q_r, db_r, preferred_element_type=jnp.float32)
    d2_p = qq_p + sq_p - 2.0 * jnp.dot(q_p, db_p, preferred_element_type=jnp.float32)
    d2_r = jnp.maximum(d2_r, 0.0)                        # (TQ, N)
    d2_p = jnp.maximum(d2_p, 0.0)

    # Stretch ratio for every candidate pair; the knn selection masks it later.
    dist_r = jnp.sqrt(d2_r)
    dist_p = jnp.sqrt(d2_p)
    stretch = jnp.maximum(dist_p / (dist_r + 1e-10) - 1.0, 0.0)   # (TQ, N)

    # Self-neighbor mask: only this tile's diagonal block can contain the
    # self column, so a (TQ,1) global row index vs. the column iota suffices.
    col = lax.broadcasted_iota(jnp.int32, (tq, n), 1)
    self_col = qi * tq + lax.broadcasted_iota(jnp.int32, (tq, 1), 0)
    work = jnp.where(col == self_col, _BIG, d2_r)

    # Unrolled min-peel over the nn_size nearest ref neighbors.
    # 2 cross-lane reductions per neighbor (exact value + tie-broken index).
    sel = None
    for k in range(nn_size):
        m = jnp.min(work, axis=-1, keepdims=True)                            # (TQ,1)
        am = jnp.min(jnp.where(work == m, col, n), axis=-1, keepdims=True)   # (TQ,1)
        hit = col == am                                                      # (TQ,N)
        if mode == "none":
            # per-k stretch, written lane-dense as row k of the (K, TQ) block
            s_k = jnp.max(jnp.where(hit, stretch, 0.0), axis=-1)             # (TQ,)
            o_ref[0, k, :] = s_k.astype(o_ref.dtype)
        else:
            sel = hit if sel is None else jnp.logical_or(sel, hit)
        if k + 1 < nn_size:
            work = jnp.where(hit, _BIG, work)

    if mode == "sum":
        o_ref[0, 0, :] = jnp.sum(jnp.where(sel, stretch, 0.0), axis=-1).astype(o_ref.dtype)
    elif mode == "max":
        o_ref[0, 0, :] = jnp.max(jnp.where(sel, stretch, 0.0), axis=-1).astype(o_ref.dtype)


def point_stretch_loss(points_ref, points, nn_size, reduction="mean", tq=128):
    """points_ref, points: (B, N, C) float32.  Matches PointStretchLoss.forward."""
    B, N, C = points_ref.shape
    assert points.shape == (B, N, C)
    assert 1 <= nn_size < N
    tq = min(tq, N)
    assert N % tq == 0, "N must be divisible by the query tile size"

    # Hoisted per-batch quantities (constant across the query-tile grid axis):
    # transposed, lane-dense DBs and their squared norms.
    db_r = jnp.swapaxes(points_ref, 1, 2)                 # (B, C, N)
    db_p = jnp.swapaxes(points, 1, 2)                     # (B, C, N)
    sq_r = jnp.sum(db_r * db_r, axis=1, keepdims=True)    # (B, 1, N)
    sq_p = jnp.sum(db_p * db_p, axis=1, keepdims=True)    # (B, 1, N)

    mode = "none" if reduction == "none" else ("max" if reduction == "max" else "sum")
    out_rows = nn_size if mode == "none" else 1

    kernel = functools.partial(_stretch_kernel, nn_size=nn_size, tq=tq, n=N, mode=mode)

    # ~8 live (TQ, N) f32/i32 slabs per step; raise the scoped VMEM limit when
    # that outgrows the default (16 MiB v5e / 32 MiB v6e+).
    est_bytes = 8 * tq * N * 4
    cparams = dict(dimension_semantics=("parallel", "parallel"))
    if est_bytes > 12 * 1024 * 1024:
        cparams["vmem_limit_bytes"] = min(2 * est_bytes, 100 * 1024 * 1024)
    # TODO(synk): for very large N on v7x, block the DB axis (running top-K
    # merge in VMEM scratch) instead of materializing full (TQ, N) slabs.

    out = pl.pallas_call(
        kernel,
        out_shape=jax.ShapeDtypeStruct((B, out_rows, N), jnp.float32),
        grid_spec=pltpu.PrefetchScalarGridSpec(
            num_scalar_prefetch=0,
            grid=(N // tq, B),  # longer (tile) axis first for multi-TC sharding
            in_specs=[
                pl.BlockSpec((1, tq, C), lambda qi, b: (b, qi, 0)),  # ref query tile
                pl.BlockSpec((1, C, N), lambda qi, b: (b, 0, 0)),    # ref DB^T
                pl.BlockSpec((1, 1, N), lambda qi, b: (b, 0, 0)),    # ||ref||^2
                pl.BlockSpec((1, tq, C), lambda qi, b: (b, qi, 0)),  # pred query tile
                pl.BlockSpec((1, C, N), lambda qi, b: (b, 0, 0)),    # pred DB^T
                pl.BlockSpec((1, 1, N), lambda qi, b: (b, 0, 0)),    # ||pred||^2
            ],
            out_specs=pl.BlockSpec((1, out_rows, tq), lambda qi, b: (b, 0, qi)),
        ),
        compiler_params=pltpu.CompilerParams(**cparams),
    )(points_ref, db_r, sq_r, points, db_p, sq_p)

    if reduction == "mean":
        return jnp.sum(out) / (B * N * nn_size)          # torch.mean(stretch)
    elif reduction == "sum":
        return jnp.mean(out)                             # mean over points of per-point sum
    elif reduction == "max":
        return jnp.mean(out)                             # mean over points of per-point max
    elif reduction == "none":
        return jnp.transpose(out, (0, 2, 1))             # (B, N, K)
    else:
        raise NotImplementedError


def _reference_stretch(points_ref, points, nn_size):
    """Pure-JAX reference of the PyTorch forward (returns the (B,N,K) stretch)."""
    B, N, C = points_ref.shape
    diff_r = points_ref[:, :, None, :] - points_ref[:, None, :, :]
    d2_r = jnp.sum(diff_r * diff_r, axis=-1)                         # (B, N, N)
    d2_r = jnp.where(jnp.eye(N, dtype=bool)[None], jnp.inf, d2_r)    # drop self
    idx = jnp.argsort(d2_r, axis=-1)[..., :nn_size]                  # stable: ties -> lower idx
    dist_ref = jnp.sqrt(jnp.take_along_axis(d2_r, idx, axis=-1))     # (B, N, K)
    diff_p = points[:, :, None, :] - points[:, None, :, :]
    d2_p = jnp.sum(diff_p * diff_p, axis=-1)
    dist = jnp.sqrt(jnp.take_along_axis(d2_p, idx, axis=-1))
    return jnp.maximum(dist / (dist_ref + 1e-10) - 1.0, 0.0)         # (B, N, K)


if __name__ == "__main__":
    key = jax.random.PRNGKey(0)
    k1, k2 = jax.random.split(key)
    B, N, C = 2, 128, 3
    nn_size = 4

    # Quantize coordinates to 1/256 so every squared distance is exactly
    # representable in f32: kernel (expanded formula on the MXU) and reference
    # (direct difference) then agree bit-for-bit on the knn ranking, removing
    # any chance of a near-tie selection mismatch in the checks below.
    points_ref = jax.random.normal(k1, (B, N, C), dtype=jnp.float32)
    points_ref = jnp.round(points_ref * 256.0) / 256.0
    points = points_ref + 0.05 * jax.random.normal(k2, (B, N, C), dtype=jnp.float32)
    points = jnp.round(points * 256.0) / 256.0

    stretch_ref = _reference_stretch(points_ref, points, nn_size)    # (B, N, K)

    got_mean = jax.block_until_ready(point_stretch_loss(points_ref, points, nn_size, "mean"))
    want_mean = jnp.mean(stretch_ref)
    assert jnp.allclose(got_mean, want_mean, rtol=1e-4, atol=1e-5), (got_mean, want_mean)

    got_sum = jax.block_until_ready(point_stretch_loss(points_ref, points, nn_size, "sum"))
    want_sum = jnp.mean(jnp.sum(stretch_ref, axis=-1))
    assert jnp.allclose(got_sum, want_sum, rtol=1e-4, atol=1e-5), (got_sum, want_sum)

    got_max = jax.block_until_ready(point_stretch_loss(points_ref, points, nn_size, "max"))
    want_max = jnp.mean(jnp.max(stretch_ref, axis=-1))
    assert jnp.allclose(got_max, want_max, rtol=1e-4, atol=1e-5), (got_max, want_max)

    got_none = jax.block_until_ready(point_stretch_loss(points_ref, points, nn_size, "none"))
    assert got_none.shape == (B, N, nn_size), got_none.shape
    assert jnp.allclose(got_none, stretch_ref, rtol=1e-4, atol=1e-5)

    print("KERNEL_OK")
</pallas_src>

<mosaic_0001>
module attributes {stable_mosaic.version = 11 : i64} {
  func.func @_stretch_kernel(%arg0: i32, %arg1: i32, %arg2: memref<1x128x3xf32, #tpu.memory_space<vmem>>, %arg3: memref<1x3x128xf32, #tpu.memory_space<vmem>>, %arg4: memref<1x1x128xf32, #tpu.memory_space<vmem>>, %arg5: memref<1x128x3xf32, #tpu.memory_space<vmem>>, %arg6: memref<1x3x128xf32, #tpu.memory_space<vmem>>, %arg7: memref<1x1x128xf32, #tpu.memory_space<vmem>>, %arg8: memref<1x1x128xf32, #tpu.memory_space<vmem>>) attributes {dimension_semantics = [#tpu.dimension_semantics<parallel>, #tpu.dimension_semantics<parallel>], iteration_bounds = array<i64: 1, 2>, scalar_prefetch = 0 : i64, scratch_operands = 0 : i64, tpu.core_type = #tpu.core_type<tc>, window_params = [{transform_indices = @transform_0, window_bounds = array<i64: 1, 128, 3>}, {transform_indices = @transform_1, window_bounds = array<i64: 1, 3, 128>}, {transform_indices = @transform_2, window_bounds = array<i64: 1, 1, 128>}, {transform_indices = @transform_3, window_bounds = array<i64: 1, 128, 3>}, {transform_indices = @transform_4, window_bounds = array<i64: 1, 3, 128>}, {transform_indices = @transform_5, window_bounds = array<i64: 1, 1, 128>}, {transform_indices = @transform_6, window_bounds = array<i64: 1, 1, 128>}]} {
    %c0 = arith.constant 0 : index
    %c0_0 = arith.constant 0 : index
    %c0_1 = arith.constant 0 : index
    %0 = vector.load %arg2[%c0, %c0_0, %c0_1] : memref<1x128x3xf32, #tpu.memory_space<vmem>>, vector<1x128x3xf32>
    %1 = vector.shape_cast %0 : vector<1x128x3xf32> to vector<128x3xf32>
    %c0_2 = arith.constant 0 : index
    %c0_3 = arith.constant 0 : index
    %c0_4 = arith.constant 0 : index
    %2 = vector.load %arg3[%c0_2, %c0_3, %c0_4] : memref<1x3x128xf32, #tpu.memory_space<vmem>>, vector<1x3x128xf32>
    %3 = vector.shape_cast %2 : vector<1x3x128xf32> to vector<3x128xf32>
    %c0_5 = arith.constant 0 : index
    %c0_6 = arith.constant 0 : index
    %c0_7 = arith.constant 0 : index
    %4 = vector.load %arg4[%c0_5, %c0_6, %c0_7] : memref<1x1x128xf32, #tpu.memory_space<vmem>>, vector<1x1x128xf32>
    %5 = vector.shape_cast %4 : vector<1x1x128xf32> to vector<1x128xf32>
    %c0_8 = arith.constant 0 : index
    %c0_9 = arith.constant 0 : index
    %c0_10 = arith.constant 0 : index
    %6 = vector.load %arg5[%c0_8, %c0_9, %c0_10] : memref<1x128x3xf32, #tpu.memory_space<vmem>>, vector<1x128x3xf32>
    %7 = vector.shape_cast %6 : vector<1x128x3xf32> to vector<128x3xf32>
    %c0_11 = arith.constant 0 : index
    %c0_12 = arith.constant 0 : index
    %c0_13 = arith.constant 0 : index
    %8 = vector.load %arg6[%c0_11, %c0_12, %c0_13] : memref<1x3x128xf32, #tpu.memory_space<vmem>>, vector<1x3x128xf32>
    %9 = vector.shape_cast %8 : vector<1x3x128xf32> to vector<3x128xf32>
    %c0_14 = arith.constant 0 : index
    %c0_15 = arith.constant 0 : index
    %c0_16 = arith.constant 0 : index
    %10 = vector.load %arg7[%c0_14, %c0_15, %c0_16] : memref<1x1x128xf32, #tpu.memory_space<vmem>>, vector<1x1x128xf32>
    %11 = vector.shape_cast %10 : vector<1x1x128xf32> to vector<1x128xf32>
    %12 = arith.mulf %1, %1 : vector<128x3xf32>
    %cst = arith.constant dense<0.000000e+00> : vector<128xf32>
    %13 = vector.multi_reduction <add>, %12, %cst [1] : vector<128x3xf32> to vector<128xf32>
    %14 = vector.shape_cast %13 : vector<128xf32> to vector<128x1xf32>
    %15 = arith.mulf %7, %7 : vector<128x3xf32>
    %cst_17 = arith.constant dense<0.000000e+00> : vector<128xf32>
    %16 = vector.multi_reduction <add>, %15, %cst_17 [1] : vector<128x3xf32> to vector<128xf32>
    %17 = vector.shape_cast %16 : vector<128xf32> to vector<128x1xf32>
    %18 = vector.broadcast %14 : vector<128x1xf32> to vector<128x128xf32>
    %19 = vector.broadcast %5 : vector<1x128xf32> to vector<128x128xf32>
    %20 = arith.addf %18, %19 : vector<128x128xf32>
    %cst_18 = arith.constant dense<0.000000e+00> : vector<128x128xf32>
    %21 = tpu.matmul %1, %3, %cst_18 {dimension_numbers = #tpu.dot_dimension_numbers<[1], [0], [0], [1], [0, 0, 1, 1], [], []>} : vector<128x3xf32>, vector<3x128xf32>, vector<128x128xf32> -> vector<128x128xf32>
    %cst_19 = arith.constant 2.000000e+00 : f32
    %22 = vector.broadcast %cst_19 : f32 to vector<128x128xf32>
    %23 = arith.mulf %22, %21 : vector<128x128xf32>
    %24 = arith.subf %20, %23 : vector<128x128xf32>
    %25 = vector.broadcast %17 : vector<128x1xf32> to vector<128x128xf32>
    %26 = vector.broadcast %11 : vector<1x128xf32> to vector<128x128xf32>
    %27 = arith.addf %25, %26 : vector<128x128xf32>
    %cst_20 = arith.constant dense<0.000000e+00> : vector<128x128xf32>
    %28 = tpu.matmul %7, %9, %cst_20 {dimension_numbers = #tpu.dot_dimension_numbers<[1], [0], [0], [1], [0, 0, 1, 1], [], []>} : vector<128x3xf32>, vector<3x128xf32>, vector<128x128xf32> -> vector<128x128xf32>
    %cst_21 = arith.constant 2.000000e+00 : f32
    %29 = vector.broadcast %cst_21 : f32 to vector<128x128xf32>
    %30 = arith.mulf %29, %28 : vector<128x128xf32>
    %31 = arith.subf %27, %30 : vector<128x128xf32>
    %cst_22 = arith.constant 0.000000e+00 : f32
    %32 = vector.broadcast %cst_22 : f32 to vector<128x128xf32>
    %33 = arith.maximumf %24, %32 : vector<128x128xf32>
    %cst_23 = arith.constant 0.000000e+00 : f32
    %34 = vector.broadcast %cst_23 : f32 to vector<128x128xf32>
    %35 = arith.maximumf %31, %34 : vector<128x128xf32>
    %36 = math.sqrt %33 : vector<128x128xf32>
    %37 = math.sqrt %35 : vector<128x128xf32>
    %cst_24 = arith.constant 1.000000e-10 : f32
    %38 = vector.broadcast %cst_24 : f32 to vector<128x128xf32>
    %39 = arith.addf %36, %38 : vector<128x128xf32>
    %40 = arith.divf %37, %39 : vector<128x128xf32>
    %cst_25 = arith.constant 1.000000e+00 : f32
    %41 = vector.broadcast %cst_25 : f32 to vector<128x128xf32>
    %42 = arith.subf %40, %41 : vector<128x128xf32>
    %cst_26 = arith.constant 0.000000e+00 : f32
    %43 = vector.broadcast %cst_26 : f32 to vector<128x128xf32>
    %44 = arith.maximumf %42, %43 : vector<128x128xf32>
    %45 = tpu.iota {dimensions = array<i32: 1>} : vector<128x128xi32>
    %c128_i32 = arith.constant 128 : i32
    %46 = arith.muli %arg0, %c128_i32 : i32
    %47 = tpu.iota {dimensions = array<i32: 0>} : vector<128x1xi32>
    %48 = vector.broadcast %46 : i32 to vector<128x1xi32>
    %49 = arith.addi %48, %47 : vector<128x1xi32>
    %50 = vector.broadcast %49 : vector<128x1xi32> to vector<128x128xi32>
    %51 = arith.cmpi eq, %45, %50 : vector<128x128xi32>
    %cst_27 = arith.constant 1.000000e+30 : f32
    %52 = vector.broadcast %cst_27 : f32 to vector<128x128xf32>
    %53 = arith.select %51, %52, %33 : vector<128x128xi1>, vector<128x128xf32>
    %cst_28 = arith.constant dense<0x7F800000> : vector<128xf32>
    %54 = vector.multi_reduction <minimumf>, %53, %cst_28 [1] : vector<128x128xf32> to vector<128xf32>
    %55 = vector.shape_cast %54 : vector<128xf32> to vector<128x1xf32>
    %56 = vector.broadcast %55 : vector<128x1xf32> to vector<128x128xf32>
    %57 = arith.cmpf oeq, %53, %56 : vector<128x128xf32>
    %c128_i32_29 = arith.constant 128 : i32
    %58 = vector.broadcast %c128_i32_29 : i32 to vector<128x128xi32>
    %59 = arith.select %57, %45, %58 : vector<128x128xi1>, vector<128x128xi32>
    %cst_30 = arith.constant dense<2147483647> : vector<128xi32>
    %60 = vector.multi_reduction <minsi>, %59, %cst_30 [1] : vector<128x128xi32> to vector<128xi32>
    %61 = vector.shape_cast %60 : vector<128xi32> to vector<128x1xi32>
    %62 = vector.broadcast %61 : vector<128x1xi32> to vector<128x128xi32>
    %63 = arith.cmpi eq, %45, %62 : vector<128x128xi32>
    %cst_31 = arith.constant 1.000000e+30 : f32
    %64 = vector.broadcast %cst_31 : f32 to vector<128x128xf32>
    %65 = arith.select %63, %64, %53 : vector<128x128xi1>, vector<128x128xf32>
    %cst_32 = arith.constant dense<0x7F800000> : vector<128xf32>
    %66 = vector.multi_reduction <minimumf>, %65, %cst_32 [1] : vector<128x128xf32> to vector<128xf32>
    %67 = vector.shape_cast %66 : vector<128xf32> to vector<128x1xf32>
    %68 = vector.broadcast %67 : vector<128x1xf32> to vector<128x128xf32>
    %69 = arith.cmpf oeq, %65, %68 : vector<128x128xf32>
    %c128_i32_33 = arith.constant 128 : i32
    %70 = vector.broadcast %c128_i32_33 : i32 to vector<128x128xi32>
    %71 = arith.select %69, %45, %70 : vector<128x128xi1>, vector<128x128xi32>
    %cst_34 = arith.constant dense<2147483647> : vector<128xi32>
    %72 = vector.multi_reduction <minsi>, %71, %cst_34 [1] : vector<128x128xi32> to vector<128xi32>
    %73 = vector.shape_cast %72 : vector<128xi32> to vector<128x1xi32>
    %74 = vector.broadcast %73 : vector<128x1xi32> to vector<128x128xi32>
    %75 = arith.cmpi eq, %45, %74 : vector<128x128xi32>
    %76 = arith.ori %63, %75 : vector<128x128xi1>
    %cst_35 = arith.constant 1.000000e+30 : f32
    %77 = vector.broadcast %cst_35 : f32 to vector<128x128xf32>
    %78 = arith.select %75, %77, %65 : vector<128x128xi1>, vector<128x128xf32>
    %cst_36 = arith.constant dense<0x7F800000> : vector<128xf32>
    %79 = vector.multi_reduction <minimumf>, %78, %cst_36 [1] : vector<128x128xf32> to vector<128xf32>
    %80 = vector.shape_cast %79 : vector<128xf32> to vector<128x1xf32>
    %81 = vector.broadcast %80 : vector<128x1xf32> to vector<128x128xf32>
    %82 = arith.cmpf oeq, %78, %81 : vector<128x128xf32>
    %c128_i32_37 = arith.constant 128 : i32
    %83 = vector.broadcast %c128_i32_37 : i32 to vector<128x128xi32>
    %84 = arith.select %82, %45, %83 : vector<128x128xi1>, vector<128x128xi32>
    %cst_38 = arith.constant dense<2147483647> : vector<128xi32>
    %85 = vector.multi_reduction <minsi>, %84, %cst_38 [1] : vector<128x128xi32> to vector<128xi32>
    %86 = vector.shape_cast %85 : vector<128xi32> to vector<128x1xi32>
    %87 = vector.broadcast %86 : vector<128x1xi32> to vector<128x128xi32>
    %88 = arith.cmpi eq, %45, %87 : vector<128x128xi32>
    %89 = arith.ori %76, %88 : vector<128x128xi1>
    %cst_39 = arith.constant 1.000000e+30 : f32
    %90 = vector.broadcast %cst_39 : f32 to vector<128x128xf32>
    %91 = arith.select %88, %90, %78 : vector<128x128xi1>, vector<128x128xf32>
    %cst_40 = arith.constant dense<0x7F800000> : vector<128xf32>
    %92 = vector.multi_reduction <minimumf>, %91, %cst_40 [1] : vector<128x128xf32> to vector<128xf32>
    %93 = vector.shape_cast %92 : vector<128xf32> to vector<128x1xf32>
    %94 = vector.broadcast %93 : vector<128x1xf32> to vector<128x128xf32>
    %95 = arith.cmpf oeq, %91, %94 : vector<128x128xf32>
    %c128_i32_41 = arith.constant 128 : i32
    %96 = vector.broadcast %c128_i32_41 : i32 to vector<128x128xi32>
    %97 = arith.select %95, %45, %96 : vector<128x128xi1>, vector<128x128xi32>
    %cst_42 = arith.constant dense<2147483647> : vector<128xi32>
    %98 = vector.multi_reduction <minsi>, %97, %cst_42 [1] : vector<128x128xi32> to vector<128xi32>
    %99 = vector.shape_cast %98 : vector<128xi32> to vector<128x1xi32>
    %100 = vector.broadcast %99 : vector<128x1xi32> to vector<128x128xi32>
    %101 = arith.cmpi eq, %45, %100 : vector<128x128xi32>
    %102 = arith.ori %89, %101 : vector<128x128xi1>
    %cst_43 = arith.constant 0.000000e+00 : f32
    %103 = vector.broadcast %cst_43 : f32 to vector<128x128xf32>
    %104 = arith.select %102, %44, %103 : vector<128x128xi1>, vector<128x128xf32>
    %cst_44 = arith.constant dense<0.000000e+00> : vector<128xf32>
    %105 = vector.multi_reduction <add>, %104, %cst_44 [1] : vector<128x128xf32> to vector<128xf32>
    %c0_45 = arith.constant 0 : index
    %c0_46 = arith.constant 0 : index
    %c0_47 = arith.constant 0 : index
    %106 = vector.load %arg8[%c0_45, %c0_46, %c0_47] : memref<1x1x128xf32, #tpu.memory_space<vmem>>, vector<1x1x128xf32>
    %107 = vector.shape_cast %106 : vector<1x1x128xf32> to vector<128xf32>
    %108 = vector.shape_cast %105 : vector<128xf32> to vector<1x1x128xf32>
    tpu.vector_store %arg8[%c0_45, %c0_46, %c0_47], %108 {strides = array<i32>} : memref<1x1x128xf32, #tpu.memory_space<vmem>>, vector<1x1x128xf32>,
    return
  }
  func.func @transform_0(%arg0: i32, %arg1: i32) -> (i32, i32, i32) {
    %c0_i32 = arith.constant 0 : i32
    %c0_i32_0 = arith.constant 0 : i32
    return %arg1, %arg0, %c0_i32 : i32, i32, i32
  }
  func.func @transform_1(%arg0: i32, %arg1: i32) -> (i32, i32, i32) {
    %c0_i32 = arith.constant 0 : i32
    %c0_i32_0 = arith.constant 0 : i32
    %c0_i32_1 = arith.constant 0 : i32
    return %arg1, %c0_i32, %c0_i32_0 : i32, i32, i32
  }
  func.func @transform_2(%arg0: i32, %arg1: i32) -> (i32, i32, i32) {
    %c0_i32 = arith.constant 0 : i32
    %c0_i32_0 = arith.constant 0 : i32
    %c0_i32_1 = arith.constant 0 : i32
    return %arg1, %c0_i32, %c0_i32_0 : i32, i32, i32
  }
  func.func @transform_3(%arg0: i32, %arg1: i32) -> (i32, i32, i32) {
    %c0_i32 = arith.constant 0 : i32
    %c0_i32_0 = arith.constant 0 : i32
    return %arg1, %arg0, %c0_i32 : i32, i32, i32
  }
  func.func @transform_4(%arg0: i32, %arg1: i32) -> (i32, i32, i32) {
    %c0_i32 = arith.constant 0 : i32
    %c0_i32_0 = arith.constant 0 : i32
    %c0_i32_1 = arith.constant 0 : i32
    return %arg1, %c0_i32, %c0_i32_0 : i32, i32, i32
  }
  func.func @transform_5(%arg0: i32, %arg1: i32) -> (i32, i32, i32) {
    %c0_i32 = arith.constant 0 : i32
    %c0_i32_0 = arith.constant 0 : i32
    %c0_i32_1 = arith.constant 0 : i32
    return %arg1, %c0_i32, %c0_i32_0 : i32, i32, i32
  }
  func.func @transform_6(%arg0: i32, %arg1: i32) -> (i32, i32, i32) {
    %c0_i32 = arith.constant 0 : i32
    %c0_i32_0 = arith.constant 0 : i32
    return %arg1, %c0_i32, %arg0 : i32, i32, i32
  }
}

</mosaic_0001>

<llo_original>
// kernel: tpu_custom_call.1
$region0: #{tpu_custom_call.1}
  #allocation0 [shape = 'u32[]', space=smem, size = 0x4, offset = 0x4, fixed_abs, tag = 'smem constant byte address 0x4 - core index']
  #allocation1 [shape = 'u32[144,128]{1,0:T(1,128)}', space=vmem, size = 0x12000, scoped, tag = 'internal scratch']
  %s0 = inlined_call_operand.vmem [shape: f32[2,128,3], index: 0, kind: input, shape index: {}]
  %s1 = inlined_call_operand.vmem [shape: f32[2,3,128], index: 1, kind: input, shape index: {}]
  %s2 = inlined_call_operand.vmem [shape: f32[2,1,128], index: 2, kind: input, shape index: {}]
  %s3 = inlined_call_operand.vmem [shape: f32[2,128,3], index: 3, kind: input, shape index: {}]
  %s4 = inlined_call_operand.vmem [shape: f32[2,3,128], index: 4, kind: input, shape index: {}]
  %s5 = inlined_call_operand.vmem [shape: f32[2,1,128], index: 5, kind: input, shape index: {}]
  %s6 = inlined_call_operand.hbm [shape: f32[2,1,128], index: 6, kind: output, shape index: {}]
  %s7 = sld [smem:[#allocation0]]
  $region57: #{tpu_custom_call.1} parent=0
    _
  %s9 = ssub.s32 1, %s7
  %s10 = scalar_select 0, %s9, %s7
  $region1: #{tpu_custom_call.1} parent=0
    #allocation2 [shape = 'u8[1024]{0}', space=vmem, size = 0x400, scoped, tag = 'output window, operand 0']
    #allocation3 [shape = 's32[2]{0}', space=sflag, size = 0x8, scoped, tag = 'scoped memory for tpu_custom_call.1']
    %11 = vsyncpa [#allocation3], 0
    %s12 = scalar_lea.sflag [#allocation3], 1
    %13 = vsyncpa %s12, 0
    loop: start=0, step=1, limit=4
    $region2: #{tpu_custom_call.1} parent=1 // loop_pre_header
      _
    $region3: #{tpu_custom_call.1} parent=1 // loop_header
      %s15 = sphi 0, %s19
      %p16 = scmp.ge.s32.totalorder %s15, 4
      %s22 = sphi 0, %s34
      %s23 = sphi 0, %s30
      %s24 = sphi 0, %s22
      %s25 = sphi 0, %s23
      %s26 = sphi 0, %s24
      %s27 = sphi 0, %s25
      %s39 = sphi 0, %s41
      %s42 = sphi 0, %s39
      %s43 = sphi 0, %s42
      %s59 = sphi 0, %s43
      %s65 = sphi 0, %s67
      %s68 = sphi 0, %s65
      %s69 = sphi 0, %s68
      %s85 = sphi 0, %s69
      %s91 = sphi 0, %s93
      %s94 = sphi 0, %s91
      %s95 = sphi 0, %s94
      %s111 = sphi 0, %s95
      %s119 = sphi 0, %s121
      %s122 = sphi 0, %s119
      %s123 = sphi 0, %s122
      %s139 = sphi 0, %s123
      %s145 = sphi 0, %s147
      %s148 = sphi 0, %s145
      %s149 = sphi 0, %s148
      %s165 = sphi 0, %s149
      %s171 = sphi 0, %s173
      %s174 = sphi 0, %s171
      %s175 = sphi 0, %s174
      %s191 = sphi 0, %s175
      %s199 = sphi 0, %s201
      %s202 = sphi 0, %s199
      %s203 = sphi 0, %s202
      %s219 = sphi 0, %s203
    $region4: #{tpu_custom_call.1} parent=1 // loop_header_branch
      %18 = sbr.rel (%p16) target = $region8
    $region5: #{tpu_custom_call.1} parent=1 // loop_body
      %s20 = ssub.s32 %s15, 1
      %s21 = ssub.s32 %s15, 2
      %s28 = sadd.s32 1, %s23
      %p29 = scmp.ge.s32.totalorder %s28, 2
      %s30 = scalar_select %p29, 0, %s28
      %s31 = sadd.s32 1, %s22
      %s32 = scalar_select %p29, %s31, %s22
      %p33 = scmp.ge.s32.totalorder %s32, 1
      %s34 = scalar_select %p33, 0, %s32
      %s35 = ssub.s32 %s23, %s30
      %s36 = ssub.s32 %s22, %s34
      %s37 = sor.u32 %s35, %s36
      %p38 = scmp.eq.s32.totalorder %s37, 0
      %s40 = sadd.s32 %s39, 1
      %s41 = scalar_select %p38, %s39, %s40
      %p44 = pneg %p38
      %p45 = scmp.eq.s32.totalorder %s15, 1
      %p46 = por %p44, %p45
      %p47 = scmp.ne.s32.totalorder %s39, %s42
      %p48 = scmp.eq.s32.totalorder %s15, 0
      %p49 = por %p47, %p48
      %p50 = scmp.ne.s32.totalorder %s39, %s42
      %p51 = scmp.eq.s32.totalorder %s20, 1
      %p52 = por %p50, %p51
      %p53 = scmp.ne.s32.totalorder %s42, %s43
      %p54 = scmp.eq.s32.totalorder %s20, 0
      %p55 = por %p53, %p54
      %p56 = scmp.ne.s32.totalorder %s42, %s43
      %p57 = scmp.eq.s32.totalorder %s21, 1
      %p58 = por %p56, %p57
      %p60 = scmp.ne.s32.totalorder %s43, %s59
      %p61 = scmp.eq.s32.totalorder %s21, 0
      %p62 = por %p60, %p61
      %s63 = ssub.s32 %s23, %s30
      %p64 = scmp.eq.s32.totalorder %s63, 0
      %s66 = sadd.s32 %s65, 1
      %s67 = scalar_select %p64, %s65, %s66
      %p70 = pneg %p64
      %p71 = scmp.eq.s32.totalorder %s15, 1
      %p72 = por %p70, %p71
      %p73 = scmp.ne.s32.totalorder %s65, %s68
      %p74 = scmp.eq.s32.totalorder %s15, 0
      %p75 = por %p73, %p74
      %p76 = scmp.ne.s32.totalorder %s65, %s68
      %p77 = scmp.eq.s32.totalorder %s20, 1
      %p78 = por %p76, %p77
      %p79 = scmp.ne.s32.totalorder %s68, %s69
      %p80 = scmp.eq.s32.totalorder %s20, 0
      %p81 = por %p79, %p80
      %p82 = scmp.ne.s32.totalorder %s68, %s69
      %p83 = scmp.eq.s32.totalorder %s21, 1
      %p84 = por %p82, %p83
      %p86 = scmp.ne.s32.totalorder %s69, %s85
      %p87 = scmp.eq.s32.totalorder %s21, 0
      %p88 = por %p86, %p87
      %s89 = ssub.s32 %s23, %s30
      %p90 = scmp.eq.s32.totalorder %s89, 0
      %s92 = sadd.s32 %s91, 1
      %s93 = scalar_select %p90, %s91, %s92
      %p96 = pneg %p90
      %p97 = scmp.eq.s32.totalorder %s15, 1
      %p98 = por %p96, %p97
      %p99 = scmp.ne.s32.totalorder %s91, %s94
      %p100 = scmp.eq.s32.totalorder %s15, 0
      %p101 = por %p99, %p100
      %p102 = scmp.ne.s32.totalorder %s91, %s94
      %p103 = scmp.eq.s32.totalorder %s20, 1
      %p104 = por %p102, %p103
      %p105 = scmp.ne.s32.totalorder %s94, %s95
      %p106 = scmp.eq.s32.totalorder %s20, 0
      %p107 = por %p105, %p106
      %p108 = scmp.ne.s32.totalorder %s94, %s95
      %p109 = scmp.eq.s32.totalorder %s21, 1
      %p110 = por %p108, %p109
      %p112 = scmp.ne.s32.totalorder %s95, %s111
      %p113 = scmp.eq.s32.totalorder %s21, 0
      %p114 = por %p112, %p113
      %s115 = ssub.s32 %s23, %s30
      %s116 = ssub.s32 %s22, %s34
      %s117 = sor.u32 %s115, %s116
      %p118 = scmp.eq.s32.totalorder %s117, 0
      %s120 = sadd.s32 %s119, 1
      %s121 = scalar_select %p118, %s119, %s120
      %p124 = pneg %p118
      %p125 = scmp.eq.s32.totalorder %s15, 1
      %p126 = por %p124, %p125
      %p127 = scmp.ne.s32.totalorder %s119, %s122
      %p128 = scmp.eq.s32.totalorder %s15, 0
      %p129 = por %p127, %p128
      %p130 = scmp.ne.s32.totalorder %s119, %s122
      %p131 = scmp.eq.s32.totalorder %s20, 1
      %p132 = por %p130, %p131
      %p133 = scmp.ne.s32.totalorder %s122, %s123
      %p134 = scmp.eq.s32.totalorder %s20, 0
      %p135 = por %p133, %p134
      %p136 = scmp.ne.s32.totalorder %s122, %s123
      %p137 = scmp.eq.s32.totalorder %s21, 1
      %p138 = por %p136, %p137
      %p140 = scmp.ne.s32.totalorder %s123, %s139
      %p141 = scmp.eq.s32.totalorder %s21, 0
      %p142 = por %p140, %p141
      %s143 = ssub.s32 %s23, %s30
      %p144 = scmp.eq.s32.totalorder %s143, 0
      %s146 = sadd.s32 %s145, 1
      %s147 = scalar_select %p144, %s145, %s146
      %p150 = pneg %p144
      %p151 = scmp.eq.s32.totalorder %s15, 1
      %p152 = por %p150, %p151
      %p153 = scmp.ne.s32.totalorder %s145, %s148
      %p154 = scmp.eq.s32.totalorder %s15, 0
      %p155 = por %p153, %p154
      %p156 = scmp.ne.s32.totalorder %s145, %s148
      %p157 = scmp.eq.s32.totalorder %s20, 1
      %p158 = por %p156, %p157
      %p159 = scmp.ne.s32.totalorder %s148, %s149
      %p160 = scmp.eq.s32.totalorder %s20, 0
      %p161 = por %p159, %p160
      %p162 = scmp.ne.s32.totalorder %s148, %s149
      %p163 = scmp.eq.s32.totalorder %s21, 1
      %p164 = por %p162, %p163
      %p166 = scmp.ne.s32.totalorder %s149, %s165
      %p167 = scmp.eq.s32.totalorder %s21, 0
      %p168 = por %p166, %p167
      %s169 = ssub.s32 %s23, %s30
      %p170 = scmp.eq.s32.totalorder %s169, 0
      %s172 = sadd.s32 %s171, 1
      %s173 = scalar_select %p170, %s171, %s172
      %p176 = pneg %p170
      %p177 = scmp.eq.s32.totalorder %s15, 1
      %p178 = por %p176, %p177
      %p179 = scmp.ne.s32.totalorder %s171, %s174
      %p180 = scmp.eq.s32.totalorder %s15, 0
      %p181 = por %p179, %p180
      %p182 = scmp.ne.s32.totalorder %s171, %s174
      %p183 = scmp.eq.s32.totalorder %s20, 1
      %p184 = por %p182, %p183
      %p185 = scmp.ne.s32.totalorder %s174, %s175
      %p186 = scmp.eq.s32.totalorder %s20, 0
      %p187 = por %p185, %p186
      %p188 = scmp.ne.s32.totalorder %s174, %s175
      %p189 = scmp.eq.s32.totalorder %s21, 1
      %p190 = por %p188, %p189
      %p192 = scmp.ne.s32.totalorder %s175, %s191
      %p193 = scmp.eq.s32.totalorder %s21, 0
      %p194 = por %p192, %p193
      %s195 = ssub.s32 %s23, %s30
      %s196 = ssub.s32 %s22, %s34
      %s197 = sor.u32 %s195, %s196
      %p198 = scmp.eq.s32.totalorder %s197, 0
      %s200 = sadd.s32 %s199, 1
      %s201 = scalar_select %p198, %s199, %s200
      %p204 = pneg %p198
      %p205 = scmp.eq.s32.totalorder %s15, 1
      %p206 = por %p204, %p205
      %p207 = scmp.ne.s32.totalorder %s199, %s202
      %p208 = scmp.eq.s32.totalorder %s15, 0
      %p209 = por %p207, %p208
      %p210 = scmp.ne.s32.totalorder %s199, %s202
      %p211 = scmp.eq.s32.totalorder %s20, 1
      %p212 = por %p210, %p211
      %p213 = scmp.ne.s32.totalorder %s202, %s203
      %p214 = scmp.eq.s32.totalorder %s20, 0
      %p215 = por %p213, %p214
      %p216 = scmp.ne.s32.totalorder %s202, %s203
      %p217 = scmp.eq.s32.totalorder %s21, 1
      %p218 = por %p216, %p217
      %p220 = scmp.ne.s32.totalorder %s203, %s219
      %p221 = scmp.eq.s32.totalorder %s21, 0
      %p222 = por %p220, %p221
      %p223 = scmp.le.s32.totalorder 1, %s15
      %p224 = scmp.lt.s32.totalorder %s15, 3
      %p225 = pnand %p223, %p224
      %p226 = pneg %p225
      // Predicated region
      $region9: #{tpu_custom_call.1} parent=5 // pred_check
        _
      $region10: #{tpu_custom_call.1} parent=5 // pred_check_branch
        %228 = sbr.rel (%p225) target = $region12
      $region11: #{tpu_custom_call.1} parent=5 // pred_region
        %s229 = ssub.s32 %s15, 1
      $region12: #{tpu_custom_call.1} parent=5 // pred_fallthru
        _
      %p230 = scmp.lt.s32.totalorder %s15, 2
      // Predicated region
      $region13: #{tpu_custom_call.1} parent=5 // pred_check
        %p231 = pneg %p230
      $region14: #{tpu_custom_call.1} parent=5 // pred_check_branch
        %233 = sbr.rel (%p231) target = $region16
      $region15: #{tpu_custom_call.1} parent=5 // pred_region
        // Predicated region
        $region17: #{tpu_custom_call.1} parent=15 // pred_check
          %p234 = pneg %p49
        $region18: #{tpu_custom_call.1} parent=15 // pred_check_branch
          %236 = sbr.rel (%p234) target = $region20
        $region19: #{tpu_custom_call.1} parent=15 // pred_region
          %s237 = smul.u32 16, %s22
          %p238 = scmp.lt.s32.totalorder %s23, 1
          %s239 = scalar_select %p238, %s23, 1
          %p240 = scmp.lt.s32.totalorder %s237, 15
          %s241 = scalar_select %p240, %s237, 15
          %s242 = smul.addr %s239, 16
          %s243 = sadd.s32 %s241, %s242
          %s244 = smul.addr %s243, 8
          %s245 = scalar_lea.vmem %s0, %s244
          %s246 = smul.u32 16, %s22
        $region20: #{tpu_custom_call.1} parent=15 // pred_fallthru
          _
        // Predicated region
        $region21: #{tpu_custom_call.1} parent=15 // pred_check
          %p247 = pneg %p75
        $region22: #{tpu_custom_call.1} parent=15 // pred_check_branch
          %249 = sbr.rel (%p247) target = $region24
        $region23: #{tpu_custom_call.1} parent=15 // pred_region
          %p250 = scmp.lt.s32.totalorder %s23, 1
          %s251 = scalar_select %p250, %s23, 1
          %s252 = smul.addr %s251, 4
          %s253 = scalar_lea.vmem %s1, %s252
        $region24: #{tpu_custom_call.1} parent=15 // pred_fallthru
          _
        // Predicated region
        $region25: #{tpu_custom_call.1} parent=15 // pred_check
          %p254 = pneg %p101
        $region26: #{tpu_custom_call.1} parent=15 // pred_check_branch
          %256 = sbr.rel (%p254) target = $region28
        $region27: #{tpu_custom_call.1} parent=15 // pred_region
          %p257 = scmp.lt.s32.totalorder %s23, 1
          %s258 = scalar_select %p257, %s23, 1
          %s259 = scalar_lea.vmem %s2, %s258
        $region28: #{tpu_custom_call.1} parent=15 // pred_fallthru
          _
        // Predicated region
        $region29: #{tpu_custom_call.1} parent=15 // pred_check
          %p260 = pneg %p129
        $region30: #{tpu_custom_call.1} parent=15 // pred_check_branch
          %262 = sbr.rel (%p260) target = $region32
        $region31: #{tpu_custom_call.1} parent=15 // pred_region
          %s263 = smul.u32 16, %s22
          %p264 = scmp.lt.s32.totalorder %s23, 1
          %s265 = scalar_select %p264, %s23, 1
          %p266 = scmp.lt.s32.totalorder %s263, 15
          %s267 = scalar_select %p266, %s263, 15
          %s268 = smul.addr %s265, 16
          %s269 = sadd.s32 %s267, %s268
          %s270 = smul.addr %s269, 8
          %s271 = scalar_lea.vmem %s3, %s270
          %s272 = smul.u32 16, %s22
        $region32: #{tpu_custom_call.1} parent=15 // pred_fallthru
          _
        // Predicated region
        $region33: #{tpu_custom_call.1} parent=15 // pred_check
          %p273 = pneg %p155
        $region34: #{tpu_custom_call.1} parent=15 // pred_check_branch
          %275 = sbr.rel (%p273) target = $region36
        $region35: #{tpu_custom_call.1} parent=15 // pred_region
          %p276 = scmp.lt.s32.totalorder %s23, 1
          %s277 = scalar_select %p276, %s23, 1
          %s278 = smul.addr %s277, 4
          %s279 = scalar_lea.vmem %s4, %s278
        $region36: #{tpu_custom_call.1} parent=15 // pred_fallthru
          _
        // Predicated region
        $region37: #{tpu_custom_call.1} parent=15 // pred_check
          %p280 = pneg %p181
        $region38: #{tpu_custom_call.1} parent=15 // pred_check_branch
          %282 = sbr.rel (%p280) target = $region40
        $region39: #{tpu_custom_call.1} parent=15 // pred_region
          %p283 = scmp.lt.s32.totalorder %s23, 1
          %s284 = scalar_select %p283, %s23, 1
          %s285 = scalar_lea.vmem %s5, %s284
        $region40: #{tpu_custom_call.1} parent=15 // pred_fallthru
          _
      $region16: #{tpu_custom_call.1} parent=5 // pred_fallthru
        _
      %p286 = scmp.le.s32.totalorder 1, %s15
      %p287 = scmp.lt.s32.totalorder %s15, 3
      %p288 = pnand %p286, %p287
      %p289 = pneg %p288
      // Predicated region
      $region41: #{tpu_custom_call.1} parent=5 // pred_check
        _
      $region42: #{tpu_custom_call.1} parent=5 // pred_check_branch
        %291 = sbr.rel (%p288) target = $region44
      $region43: #{tpu_custom_call.1} parent=5 // pred_region
        %s292 = ssub.s32 %s15, 1
        %s293 = smul.u32 16, %s24
        %p294 = scmp.lt.s32.totalorder %s25, 1
        %s295 = scalar_select %p294, %s25, 1
        %p296 = scmp.lt.s32.totalorder %s293, 15
        %s297 = scalar_select %p296, %s293, 15
        %s298 = smul.addr %s295, 16
        %s299 = sadd.s32 %s297, %s298
        %s300 = smul.addr %s299, 8
        %s301 = scalar_lea.vmem %s0, %s300
        %p302 = pneg %p55
        %p303 = pneg %p52
        %p304 = scmp.lt.s32.totalorder %s25, 1
        %s305 = scalar_select %p304, %s25, 1
        %s306 = smul.addr %s305, 4
        %s307 = scalar_lea.vmem %s1, %s306
        %p308 = pneg %p81
        %p309 = pneg %p78
        %p310 = scmp.lt.s32.totalorder %s25, 1
        %s311 = scalar_select %p310, %s25, 1
        %s312 = scalar_lea.vmem %s2, %s311
        %p313 = pneg %p107
        %p314 = pneg %p104
        %s315 = smul.u32 16, %s24
        %p316 = scmp.lt.s32.totalorder %s25, 1
        %s317 = scalar_select %p316, %s25, 1
        %p318 = scmp.lt.s32.totalorder %s315, 15
        %s319 = scalar_select %p318, %s315, 15
        %s320 = smul.addr %s317, 16
        %s321 = sadd.s32 %s319, %s320
        %s322 = smul.addr %s321, 8
        %s323 = scalar_lea.vmem %s3, %s322
        %p324 = pneg %p135
        %p325 = pneg %p132
        %p326 = scmp.lt.s32.totalorder %s25, 1
        %s327 = scalar_select %p326, %s25, 1
        %s328 = smul.addr %s327, 4
        %s329 = scalar_lea.vmem %s4, %s328
        %p330 = pneg %p161
        %p331 = pneg %p158
        %p332 = scmp.lt.s32.totalorder %s25, 1
        %s333 = scalar_select %p332, %s25, 1
        %s334 = scalar_lea.vmem %s5, %s333
        %p335 = pneg %p187
        %p336 = pneg %p184
        %p337 = pneg %p215
        %p338 = pneg %p212
        %s339 = sand.u32 %s202, 1
        %s340 = scalar_lea.sflag [#allocation3], %s339
        %s341 = sand.u32 %s202, 1
        %s342 = scalar_lea.vmem [#allocation2], %s341
        %s343 = smul.u32 16, %s24
        %p344 = scmp.lt.s32.totalorder %s25, 1
        %s345 = scalar_select %p344, %s25, 1
        %p346 = scmp.lt.s32.totalorder %s343, 15
        %s347 = scalar_select %p346, %s343, 15
        %s348 = smul.addr %s345, 16
        %s349 = sadd.s32 %s347, %s348
        %s350 = smul.addr %s349, 8
        %s351 = scalar_lea.vmem %s0, %s350
        %s352 = smul.u32 16, %s24
        %p353 = scmp.lt.s32.totalorder %s25, 1
        %s354 = scalar_select %p353, %s25, 1
        %s355 = smul.addr %s354, 4
        %s356 = scalar_lea.vmem %s1, %s355
        %p357 = scmp.lt.s32.totalorder %s25, 1
        %s358 = scalar_select %p357, %s25, 1
        %s359 = scalar_lea.vmem %s2, %s358
        %s360 = smul.u32 16, %s24
        %p361 = scmp.lt.s32.totalorder %s25, 1
        %s362 = scalar_select %p361, %s25, 1
        %p363 = scmp.lt.s32.totalorder %s360, 15
        %s364 = scalar_select %p363, %s360, 15
        %s365 = smul.addr %s362, 16
        %s366 = sadd.s32 %s364, %s365
        %s367 = smul.addr %s366, 8
        %s368 = scalar_lea.vmem %s3, %s367
        %s369 = smul.u32 16, %s24
        %p370 = scmp.lt.s32.totalorder %s25, 1
        %s371 = scalar_select %p370, %s25, 1
        %s372 = smul.addr %s371, 4
        %s373 = scalar_lea.vmem %s4, %s372
        %p374 = scmp.lt.s32.totalorder %s25, 1
        %s375 = scalar_select %p374, %s25, 1
        %s376 = scalar_lea.vmem %s5, %s375
        %v377 = vld [vmem:[%s351] sm:$0xff]
        %v378 = vld [vmem:[%s351 + $0x8] sm:$0xff]
        %v379 = vld [vmem:[%s351 + $0x10] sm:$0xff]
        %v380 = vld [vmem:[%s351 + $0x18] sm:$0xff]
        %v381 = vld [vmem:[%s351 + $0x20] sm:$0xff]
        %v382 = vld [vmem:[%s351 + $0x28] sm:$0xff]
        %v383 = vld [vmem:[%s351 + $0x30] sm:$0xff]
        %v384 = vld [vmem:[%s351 + $0x38] sm:$0xff]
        %v385 = vld [vmem:[%s351 + $0x40] sm:$0xff]
        %v386 = vld [vmem:[%s351 + $0x48] sm:$0xff]
        %v387 = vld [vmem:[%s351 + $0x50] sm:$0xff]
        %v388 = vld [vmem:[%s351 + $0x58] sm:$0xff]
        %v389 = vld [vmem:[%s351 + $0x60] sm:$0xff]
        %v390 = vld [vmem:[%s351 + $0x68] sm:$0xff]
        %v391 = vld [vmem:[%s351 + $0x70] sm:$0xff]
        %v392 = vld [vmem:[%s351 + $0x78] sm:$0xff]
        %v393 = vld [vmem:[%s356] sm:$0x7]
        %v394 = vld [vmem:[%s359] sm:$0x1]
        %v395 = vld [vmem:[%s368] sm:$0xff]
        %v396 = vld [vmem:[%s368 + $0x8] sm:$0xff]
        %v397 = vld [vmem:[%s368 + $0x10] sm:$0xff]
        %v398 = vld [vmem:[%s368 + $0x18] sm:$0xff]
        %v399 = vld [vmem:[%s368 + $0x20] sm:$0xff]
        %v400 = vld [vmem:[%s368 + $0x28] sm:$0xff]
        %v401 = vld [vmem:[%s368 + $0x30] sm:$0xff]
        %v402 = vld [vmem:[%s368 + $0x38] sm:$0xff]
        %v403 = vld [vmem:[%s368 + $0x40] sm:$0xff]
        %v404 = vld [vmem:[%s368 + $0x48] sm:$0xff]
        %v405 = vld [vmem:[%s368 + $0x50] sm:$0xff]
        %v406 = vld [vmem:[%s368 + $0x58] sm:$0xff]
        %v407 = vld [vmem:[%s368 + $0x60] sm:$0xff]
        %v408 = vld [vmem:[%s368 + $0x68] sm:$0xff]
        %v409 = vld [vmem:[%s368 + $0x70] sm:$0xff]
        %v410 = vld [vmem:[%s368 + $0x78] sm:$0xff]
        %v411 = vld [vmem:[%s373] sm:$0x7]
        %v412 = vld [vmem:[%s376] sm:$0x1]
        %v413 = vmul.f32 %v377, %v377
        %v414 = vmul.f32 %v378, %v378
        %v415 = vmul.f32 %v379, %v379
        %v416 = vmul.f32 %v380, %v380
        %v417 = vmul.f32 %v381, %v381
        %v418 = vmul.f32 %v382, %v382
        %v419 = vmul.f32 %v383, %v383
        %v420 = vmul.f32 %v384, %v384
        %v421 = vmul.f32 %v385, %v385
        %v422 = vmul.f32 %v386, %v386
        %v423 = vmul.f32 %v387, %v387
        %v424 = vmul.f32 %v388, %v388
        %v425 = vmul.f32 %v389, %v389
        %v426 = vmul.f32 %v390, %v390
        %v427 = vmul.f32 %v391, %v391
        %v428 = vmul.f32 %v392, %v392
        %vm429 = vcmask 23552
        %v430 = vsel %vm429, %v413, 0.0
        %431 = vadd.xlane.f32.xlu0 %v430
        %v432 = vpop.xlane.xlu0 %431
        %v433 = vsel %vm429, %v414, 0.0
        %434 = vadd.xlane.f32.xlu0 %v433
        %v435 = vpop.xlane.xlu0 %434
        %v436 = vsel %vm429, %v415, 0.0
        %437 = vadd.xlane.f32.xlu0 %v436
        %v438 = vpop.xlane.xlu0 %437
        %v439 = vsel %vm429, %v416, 0.0
        %440 = vadd.xlane.f32.xlu0 %v439
        %v441 = vpop.xlane.xlu0 %440
        %v442 = vsel %vm429, %v417, 0.0
        %443 = vadd.xlane.f32.xlu0 %v442
        %v444 = vpop.xlane.xlu0 %443
        %v445 = vsel %vm429, %v418, 0.0
        %446 = vadd.xlane.f32.xlu0 %v445
        %v447 = vpop.xlane.xlu0 %446
        %v448 = vsel %vm429, %v419, 0.0
        %449 = vadd.xlane.f32.xlu0 %v448
        %v450 = vpop.xlane.xlu0 %449
        %v451 = vsel %vm429, %v420, 0.0
        %452 = vadd.xlane.f32.xlu0 %v451
        %v453 = vpop.xlane.xlu0 %452
        %v454 = vsel %vm429, %v421, 0.0
        %455 = vadd.xlane.f32.xlu0 %v454
        %v456 = vpop.xlane.xlu0 %455
        %v457 = vsel %vm429, %v422, 0.0
        %458 = vadd.xlane.f32.xlu0 %v457
        %v459 = vpop.xlane.xlu0 %458
        %v460 = vsel %vm429, %v423, 0.0
        %461 = vadd.xlane.f32.xlu0 %v460
        %v462 = vpop.xlane.xlu0 %461
        %v463 = vsel %vm429, %v424, 0.0
        %464 = vadd.xlane.f32.xlu0 %v463
        %v465 = vpop.xlane.xlu0 %464
        %v466 = vsel %vm429, %v425, 0.0
        %467 = vadd.xlane.f32.xlu0 %v466
        %v468 = vpop.xlane.xlu0 %467
        %v469 = vsel %vm429, %v426, 0.0
        %470 = vadd.xlane.f32.xlu0 %v469
        %v471 = vpop.xlane.xlu0 %470
        %v472 = vsel %vm429, %v427, 0.0
        %473 = vadd.xlane.f32.xlu0 %v472
        %v474 = vpop.xlane.xlu0 %473
        %v475 = vsel %vm429, %v428, 0.0
        %476 = vadd.xlane.f32.xlu0 %v475
        %v477 = vpop.xlane.xlu0 %476
        %v478 = vmul.f32 %v395, %v395
        %v479 = vmul.f32 %v396, %v396
        %v480 = vmul.f32 %v397, %v397
        %v481 = vmul.f32 %v398, %v398
        %v482 = vmul.f32 %v399, %v399
        %v483 = vmul.f32 %v400, %v400
        %v484 = vmul.f32 %v401, %v401
        %v485 = vmul.f32 %v402, %v402
        %v486 = vmul.f32 %v403, %v403
        %v487 = vmul.f32 %v404, %v404
        %v488 = vmul.f32 %v405, %v405
        %v489 = vmul.f32 %v406, %v406
        %v490 = vmul.f32 %v407, %v407
        %v491 = vmul.f32 %v408, %v408
        %v492 = vmul.f32 %v409, %v409
        %v493 = vmul.f32 %v410, %v410
        %v494 = vsel %vm429, %v478, 0.0
        %495 = vadd.xlane.f32.xlu0 %v494
        %v496 = vpop.xlane.xlu0 %495
        %v497 = vsel %vm429, %v479, 0.0
        %498 = vadd.xlane.f32.xlu0 %v497
        %v499 = vpop.xlane.xlu0 %498
        %v500 = vsel %vm429, %v480, 0.0
        %501 = vadd.xlane.f32.xlu0 %v500
        %v502 = vpop.xlane.xlu0 %501
        %v503 = vsel %vm429, %v481, 0.0
        %504 = vadd.xlane.f32.xlu0 %v503
        %v505 = vpop.xlane.xlu0 %504
        %v506 = vsel %vm429, %v482, 0.0
        %507 = vadd.xlane.f32.xlu0 %v506
        %v508 = vpop.xlane.xlu0 %507
        %v509 = vsel %vm429, %v483, 0.0
        %510 = vadd.xlane.f32.xlu0 %v509
        %v511 = vpop.xlane.xlu0 %510
        %v512 = vsel %vm429, %v484, 0.0
        %513 = vadd.xlane.f32.xlu0 %v512
        %v514 = vpop.xlane.xlu0 %513
        %v515 = vsel %vm429, %v485, 0.0
        %516 = vadd.xlane.f32.xlu0 %v515
        %v517 = vpop.xlane.xlu0 %516
        %v518 = vsel %vm429, %v486, 0.0
        %519 = vadd.xlane.f32.xlu0 %v518
        %v520 = vpop.xlane.xlu0 %519
        %v521 = vsel %vm429, %v487, 0.0
        %522 = vadd.xlane.f32.xlu0 %v521
        %v523 = vpop.xlane.xlu0 %522
        %v524 = vsel %vm429, %v488, 0.0
        %525 = vadd.xlane.f32.xlu0 %v524
        %v526 = vpop.xlane.xlu0 %525
        %v527 = vsel %vm429, %v489, 0.0
        %528 = vadd.xlane.f32.xlu0 %v527
        %v529 = vpop.xlane.xlu0 %528
        %v530 = vsel %vm429, %v490, 0.0
        %531 = vadd.xlane.f32.xlu0 %v530
        %v532 = vpop.xlane.xlu0 %531
        %v533 = vsel %vm429, %v491, 0.0
        %534 = vadd.xlane.f32.xlu0 %v533
        %v535 = vpop.xlane.xlu0 %534
        %v536 = vsel %vm429, %v492, 0.0
        %537 = vadd.xlane.f32.xlu0 %v536
        %v538 = vpop.xlane.xlu0 %537
        %v539 = vsel %vm429, %v493, 0.0
        %540 = vadd.xlane.f32.xlu0 %v539
        %v541 = vpop.xlane.xlu0 %540
        %v543 = vlaneseq
        %v544 = vshrl.u32 %v543, 7
        %v545 = vsub.s32 0, %v544
        %v546 = vrot.slane %v394, %v545
        %v548 = vadd.f32 %v432, %v546
        %v549 = vadd.f32 %v435, %v546
        %v550 = vadd.f32 %v438, %v546
        %v551 = vadd.f32 %v441, %v546
        %v552 = vadd.f32 %v444, %v546
        %v553 = vadd.f32 %v447, %v546
        %v554 = vadd.f32 %v450, %v546
        %v555 = vadd.f32 %v453, %v546
        %v556 = vadd.f32 %v456, %v546
        %v557 = vadd.f32 %v459, %v546
        %v558 = vadd.f32 %v462, %v546
        %v559 = vadd.f32 %v465, %v546
        %v560 = vadd.f32 %v468, %v546
        %v561 = vadd.f32 %v471, %v546
        %v562 = vadd.f32 %v474, %v546
        %v563 = vadd.f32 %v477, %v546
        %v565 = vsel %vm429, %v377, 0
        %v568 = vsel %vm429, %v378, 0
        %v571 = vsel %vm429, %v379, 0
        %v574 = vsel %vm429, %v380, 0
        %v577 = vsel %vm429, %v381, 0
        %v580 = vsel %vm429, %v382, 0
        %v583 = vsel %vm429, %v383, 0
        %v586 = vsel %vm429, %v384, 0
        %v589 = vsel %vm429, %v385, 0
        %v592 = vsel %vm429, %v386, 0
        %v595 = vsel %vm429, %v387, 0
        %v598 = vsel %vm429, %v388, 0
        %v601 = vsel %vm429, %v389, 0
        %v604 = vsel %vm429, %v390, 0
        %v607 = vsel %vm429, %v391, 0
        %v610 = vsel %vm429, %v392, 0
        %vm612 = vcmask 1042432
        %v614 = vsel %vm612, %v393, 0
        %616 = vmatprep.subr.mxu0 0.0
        %617 = vmatpush1.msra.mxu0 %v614
        %618 = vmatprep.subr.mxu0 0.0
        %619 = vmatpush1.msra.mxu0 0.0
        %620 = vmatprep.subr.mxu0 0.0
        %621 = vmatpush1.msra.mxu0 0.0
        %622 = vmatprep.subr.mxu0 0.0
        %623 = vmatpush1.msra.mxu0 0.0
        %624 = vmatprep.subr.mxu0 0.0
        %625 = vmatpush1.msra.mxu0 0.0
        %626 = vmatprep.subr.mxu0 0.0
        %627 = vmatpush1.msra.mxu0 0.0
        %628 = vmatprep.subr.mxu0 0.0
        %629 = vmatpush1.msra.mxu0 0.0
        %630 = vmatprep.subr.mxu0 0.0
        %631 = vmatpush1.msra.mxu0 0.0
        %632 = vmatprep.subr.mxu0 0.0
        %633 = vmatpush1.msra.mxu0 0.0
        %634 = vmatprep.subr.mxu0 0.0
        %635 = vmatpush1.msra.mxu0 0.0
        %636 = vmatprep.subr.mxu0 0.0
        %637 = vmatpush1.msra.mxu0 0.0
        %638 = vmatprep.subr.mxu0 0.0
        %639 = vmatpush1.msra.mxu0 0.0
        %640 = vmatprep.subr.mxu0 0.0
        %641 = vmatpush1.msra.mxu0 0.0
        %642 = vmatprep.subr.mxu0 0.0
        %643 = vmatpush1.msra.mxu0 0.0
        %644 = vmatprep.subr.mxu0 0.0
        %645 = vmatpush1.msra.mxu0 0.0
        %646 = vmatprep.subr.mxu0 0.0
        %647 = vmatpush1.msra.mxu0 0.0
        %648 = vmatprep.subr.mxu0 0.0
        %649 = vmatpush1.msra.mxu0 0.0
        %650 = vmatprep.subr.mxu0 0.0
        %651 = vmatpush1.msra.mxu0 0.0
        %652 = vmatprep.subr.mxu0 0.0
        %653 = vmatpush1.msra.mxu0 0.0
        %654 = vmatprep.subr.mxu0 0.0
        %655 = vmatpush1.msra.mxu0 0.0
        %656 = vmatprep.subr.mxu0 0.0
        %657 = vmatpush1.msra.mxu0 0.0
        %658 = vmatprep.subr.mxu0 0.0
        %659 = vmatpush1.msra.mxu0 0.0
        %660 = vmatprep.subr.mxu0 0.0
        %661 = vmatpush1.msra.mxu0 0.0
        %662 = vmatprep.subr.mxu0 0.0
        %663 = vmatpush1.msra.mxu0 0.0
        %664 = vmatprep.subr.mxu0 0.0
        %665 = vmatpush1.msra.mxu0 0.0
        %666 = vmatprep.subr.mxu0 0.0
        %667 = vmatpush1.msra.mxu0 0.0
        %668 = vmatprep.subr.mxu0 0.0
        %669 = vmatpush1.msra.mxu0 0.0
        %670 = vmatprep.subr.mxu0 0.0
        %671 = vmatpush1.msra.mxu0 0.0
        %672 = vmatprep.subr.mxu0 0.0
        %673 = vmatpush1.msra.mxu0 0.0
        %674 = vmatprep.subr.mxu0 0.0
        %675 = vmatpush1.msra.mxu0 0.0
        %676 = vmatprep.subr.mxu0 0.0
        %677 = vmatpush1.msra.mxu0 0.0
        %678 = vmatprep.subr.mxu0 0.0
        %679 = vmatpush1.msra.mxu0 0.0
        %680 = vmatprep.mubr.f32.mxu0 0.0
        %681 = vmatmul.mubr.f32.gmra.mrb[0].mxu0 %v565
        %v682 = vpop.f32.mrb[0].mxu0
        %v683 = vadd.f32 0.0, %v682
        %v684 = vpop.f32.mrb[0].mxu0
        %685 = vmatprep.mubr.f32.mxu0 0.0
        %686 = vmatmul.mubr.f32.gmra.mrb[0].mxu0 %v568
        %v687 = vpop.f32.mrb[0].mxu0
        %v688 = vadd.f32 0.0, %v687
        %v689 = vpop.f32.mrb[0].mxu0
        %690 = vmatprep.mubr.f32.mxu0 0.0
        %691 = vmatmul.mubr.f32.gmra.mrb[0].mxu0 %v571
        %v692 = vpop.f32.mrb[0].mxu0
        %v693 = vadd.f32 0.0, %v692
        %v694 = vpop.f32.mrb[0].mxu0
        %695 = vmatprep.mubr.f32.mxu0 0.0
        %696 = vmatmul.mubr.f32.gmra.mrb[0].mxu0 %v574
        %v697 = vpop.f32.mrb[0].mxu0
        %v698 = vadd.f32 0.0, %v697
        %v699 = vpop.f32.mrb[0].mxu0
        %700 = vmatprep.mubr.f32.mxu0 0.0
        %701 = vmatmul.mubr.f32.gmra.mrb[0].mxu0 %v577
        %v702 = vpop.f32.mrb[0].mxu0
        %v703 = vadd.f32 0.0, %v702
        %v704 = vpop.f32.mrb[0].mxu0
        %705 = vmatprep.mubr.f32.mxu0 0.0
        %706 = vmatmul.mubr.f32.gmra.mrb[0].mxu0 %v580
        %v707 = vpop.f32.mrb[0].mxu0
        %v708 = vadd.f32 0.0, %v707
        %v709 = vpop.f32.mrb[0].mxu0
        %710 = vmatprep.mubr.f32.mxu0 0.0
        %711 = vmatmul.mubr.f32.gmra.mrb[0].mxu0 %v583
        %v712 = vpop.f32.mrb[0].mxu0
        %v713 = vadd.f32 0.0, %v712
        %v714 = vpop.f32.mrb[0].mxu0
        %715 = vmatprep.mubr.f32.mxu0 0.0
        %716 = vmatmul.mubr.f32.gmra.mrb[0].mxu0 %v586
        %v717 = vpop.f32.mrb[0].mxu0
        %v718 = vadd.f32 0.0, %v717
        %v719 = vpop.f32.mrb[0].mxu0
        %720 = vmatprep.mubr.f32.mxu0 0.0
        %721 = vmatmul.mubr.f32.gmra.mrb[0].mxu0 %v589
        %v722 = vpop.f32.mrb[0].mxu0
        %v723 = vadd.f32 0.0, %v722
        %v724 = vpop.f32.mrb[0].mxu0
        %725 = vmatprep.mubr.f32.mxu0 0.0
        %726 = vmatmul.mubr.f32.gmra.mrb[0].mxu0 %v592
        %v727 = vpop.f32.mrb[0].mxu0
        %v728 = vadd.f32 0.0, %v727
        %v729 = vpop.f32.mrb[0].mxu0
        %730 = vmatprep.mubr.f32.mxu0 0.0
        %731 = vmatmul.mubr.f32.gmra.mrb[0].mxu0 %v595
        %v732 = vpop.f32.mrb[0].mxu0
        %v733 = vadd.f32 0.0, %v732
        %v734 = vpop.f32.mrb[0].mxu0
        %735 = vmatprep.mubr.f32.mxu0 0.0
        %736 = vmatmul.mubr.f32.gmra.mrb[0].mxu0 %v598
        %v737 = vpop.f32.mrb[0].mxu0
        %v738 = vadd.f32 0.0, %v737
        %v739 = vpop.f32.mrb[0].mxu0
        %740 = vmatprep.mubr.f32.mxu0 0.0
        %741 = vmatmul.mubr.f32.gmra.mrb[0].mxu0 %v601
        %v742 = vpop.f32.mrb[0].mxu0
        %v743 = vadd.f32 0.0, %v742
        %v744 = vpop.f32.mrb[0].mxu0
        %745 = vmatprep.mubr.f32.mxu0 0.0
        %746 = vmatmul.mubr.f32.gmra.mrb[0].mxu0 %v604
        %v747 = vpop.f32.mrb[0].mxu0
        %v748 = vadd.f32 0.0, %v747
        %v749 = vpop.f32.mrb[0].mxu0
        %750 = vmatprep.mubr.f32.mxu0 0.0
        %751 = vmatmul.mubr.f32.gmra.mrb[0].mxu0 %v607
        %v752 = vpop.f32.mrb[0].mxu0
        %v753 = vadd.f32 0.0, %v752
        %v754 = vpop.f32.mrb[0].mxu0
        %755 = vmatprep.mubr.f32.mxu0 0.0
        %756 = vmatmul.mubr.f32.gmra.mrb[0].mxu0 %v610
        %v757 = vpop.f32.mrb[0].mxu0
        %v758 = vadd.f32 0.0, %v757
        %v759 = vpop.f32.mrb[0].mxu0
        %760 = vdwg.mxu0
        %v761 = vmul.f32 %v683, 2.0
        %v762 = vmul.f32 %v688, 2.0
        %v763 = vmul.f32 %v693, 2.0
        %v764 = vmul.f32 %v698, 2.0
        %v765 = vmul.f32 %v703, 2.0
        %v766 = vmul.f32 %v708, 2.0
        %v767 = vmul.f32 %v713, 2.0
        %v768 = vmul.f32 %v718, 2.0
        %v769 = vmul.f32 %v723, 2.0
        %v770 = vmul.f32 %v728, 2.0
        %v771 = vmul.f32 %v733, 2.0
        %v772 = vmul.f32 %v738, 2.0
        %v773 = vmul.f32 %v743, 2.0
        %v774 = vmul.f32 %v748, 2.0
        %v775 = vmul.f32 %v753, 2.0
        %v776 = vmul.f32 %v758, 2.0
        %v777 = vsub.f32 %v548, %v761
        %v778 = vsub.f32 %v549, %v762
        %v779 = vsub.f32 %v550, %v763
        %v780 = vsub.f32 %v551, %v764
        %v781 = vsub.f32 %v552, %v765
        %v782 = vsub.f32 %v553, %v766
        %v783 = vsub.f32 %v554, %v767
        %v784 = vsub.f32 %v555, %v768
        %v785 = vsub.f32 %v556, %v769
        %v786 = vsub.f32 %v557, %v770
        %v787 = vsub.f32 %v558, %v771
        %v788 = vsub.f32 %v559, %v772
        %v789 = vsub.f32 %v560, %v773
        %v790 = vsub.f32 %v561, %v774
        %v791 = vsub.f32 %v562, %v775
        %v792 = vsub.f32 %v563, %v776
        %v794 = vlaneseq
        %v795 = vshrl.u32 %v794, 7
        %v796 = vsub.s32 0, %v795
        %v797 = vrot.slane %v412, %v796
        %v799 = vadd.f32 %v496, %v797
        %v800 = vadd.f32 %v499, %v797
        %v801 = vadd.f32 %v502, %v797
        %v802 = vadd.f32 %v505, %v797
        %v803 = vadd.f32 %v508, %v797
        %v804 = vadd.f32 %v511, %v797
        %v805 = vadd.f32 %v514, %v797
        %v806 = vadd.f32 %v517, %v797
        %v807 = vadd.f32 %v520, %v797
        %v808 = vadd.f32 %v523, %v797
        %v809 = vadd.f32 %v526, %v797
        %v810 = vadd.f32 %v529, %v797
        %v811 = vadd.f32 %v532, %v797
        %v812 = vadd.f32 %v535, %v797
        %v813 = vadd.f32 %v538, %v797
        %v814 = vadd.f32 %v541, %v797
        %v816 = vsel %vm429, %v395, 0
        %v819 = vsel %vm429, %v396, 0
        %v822 = vsel %vm429, %v397, 0
        %v825 = vsel %vm429, %v398, 0
        %v828 = vsel %vm429, %v399, 0
        %v831 = vsel %vm429, %v400, 0
        %v834 = vsel %vm429, %v401, 0
        %v837 = vsel %vm429, %v402, 0
        %v840 = vsel %vm429, %v403, 0
        %v843 = vsel %vm429, %v404, 0
        %v846 = vsel %vm429, %v405, 0
        %v849 = vsel %vm429, %v406, 0
        %v852 = vsel %vm429, %v407, 0
        %v855 = vsel %vm429, %v408, 0
        %v858 = vsel %vm429, %v409, 0
        %v861 = vsel %vm429, %v410, 0
        %v864 = vsel %vm612, %v411, 0
        %866 = vmatprep.subr.mxu0 0.0
        %867 = vmatpush1.msra.mxu0 %v864
        %868 = vmatprep.subr.mxu0 0.0
        %869 = vmatpush1.msra.mxu0 0.0
        %870 = vmatprep.subr.mxu0 0.0
        %871 = vmatpush1.msra.mxu0 0.0
        %872 = vmatprep.subr.mxu0 0.0
        %873 = vmatpush1.msra.mxu0 0.0
        %874 = vmatprep.subr.mxu0 0.0
        %875 = vmatpush1.msra.mxu0 0.0
        %876 = vmatprep.subr.mxu0 0.0
        %877 = vmatpush1.msra.mxu0 0.0
        %878 = vmatprep.subr.mxu0 0.0
        %879 = vmatpush1.msra.mxu0 0.0
        %880 = vmatprep.subr.mxu0 0.0
        %881 = vmatpush1.msra.mxu0 0.0
        %882 = vmatprep.subr.mxu0 0.0
        %883 = vmatpush1.msra.mxu0 0.0
        %884 = vmatprep.subr.mxu0 0.0
        %885 = vmatpush1.msra.mxu0 0.0
        %886 = vmatprep.subr.mxu0 0.0
        %887 = vmatpush1.msra.mxu0 0.0
        %888 = vmatprep.subr.mxu0 0.0
        %889 = vmatpush1.msra.mxu0 0.0
        %890 = vmatprep.subr.mxu0 0.0
        %891 = vmatpush1.msra.mxu0 0.0
        %892 = vmatprep.subr.mxu0 0.0
        %893 = vmatpush1.msra.mxu0 0.0
        %894 = vmatprep.subr.mxu0 0.0
        %895 = vmatpush1.msra.mxu0 0.0
        %896 = vmatprep.subr.mxu0 0.0
        %897 = vmatpush1.msra.mxu0 0.0
        %898 = vmatprep.subr.mxu0 0.0
        %899 = vmatpush1.msra.mxu0 0.0
        %900 = vmatprep.subr.mxu0 0.0
        %901 = vmatpush1.msra.mxu0 0.0
        %902 = vmatprep.subr.mxu0 0.0
        %903 = vmatpush1.msra.mxu0 0.0
        %904 = vmatprep.subr.mxu0 0.0
        %905 = vmatpush1.msra.mxu0 0.0
        %906 = vmatprep.subr.mxu0 0.0
        %907 = vmatpush1.msra.mxu0 0.0
        %908 = vmatprep.subr.mxu0 0.0
        %909 = vmatpush1.msra.mxu0 0.0
        %910 = vmatprep.subr.mxu0 0.0
        %911 = vmatpush1.msra.mxu0 0.0
        %912 = vmatprep.subr.mxu0 0.0
        %913 = vmatpush1.msra.mxu0 0.0
        %914 = vmatprep.subr.mxu0 0.0
        %915 = vmatpush1.msra.mxu0 0.0
        %916 = vmatprep.subr.mxu0 0.0
        %917 = vmatpush1.msra.mxu0 0.0
        %918 = vmatprep.subr.mxu0 0.0
        %919 = vmatpush1.msra.mxu0 0.0
        %920 = vmatprep.subr.mxu0 0.0
        %921 = vmatpush1.msra.mxu0 0.0
        %922 = vmatprep.subr.mxu0 0.0
        %923 = vmatpush1.msra.mxu0 0.0
        %924 = vmatprep.subr.mxu0 0.0
        %925 = vmatpush1.msra.mxu0 0.0
        %926 = vmatprep.subr.mxu0 0.0
        %927 = vmatpush1.msra.mxu0 0.0
        %928 = vmatprep.subr.mxu0 0.0
        %929 = vmatpush1.msra.mxu0 0.0
        %930 = vmatprep.mubr.f32.mxu0 0.0
        %931 = vmatmul.mubr.f32.gmra.mrb[0].mxu0 %v816
        %v932 = vpop.f32.mrb[0].mxu0
        %v933 = vadd.f32 0.0, %v932
        %v934 = vpop.f32.mrb[0].mxu0
        %935 = vmatprep.mubr.f32.mxu0 0.0
        %936 = vmatmul.mubr.f32.gmra.mrb[0].mxu0 %v819
        %v937 = vpop.f32.mrb[0].mxu0
        %v938 = vadd.f32 0.0, %v937
        %v939 = vpop.f32.mrb[0].mxu0
        %940 = vmatprep.mubr.f32.mxu0 0.0
        %941 = vmatmul.mubr.f32.gmra.mrb[0].mxu0 %v822
        %v942 = vpop.f32.mrb[0].mxu0
        %v943 = vadd.f32 0.0, %v942
        %v944 = vpop.f32.mrb[0].mxu0
        %945 = vmatprep.mubr.f32.mxu0 0.0
        %946 = vmatmul.mubr.f32.gmra.mrb[0].mxu0 %v825
        %v947 = vpop.f32.mrb[0].mxu0
        %v948 = vadd.f32 0.0, %v947
        %v949 = vpop.f32.mrb[0].mxu0
        %950 = vmatprep.mubr.f32.mxu0 0.0
        %951 = vmatmul.mubr.f32.gmra.mrb[0].mxu0 %v828
        %v952 = vpop.f32.mrb[0].mxu0
        %v953 = vadd.f32 0.0, %v952
        %v954 = vpop.f32.mrb[0].mxu0
        %955 = vmatprep.mubr.f32.mxu0 0.0
        %956 = vmatmul.mubr.f32.gmra.mrb[0].mxu0 %v831
        %v957 = vpop.f32.mrb[0].mxu0
        %v958 = vadd.f32 0.0, %v957
        %v959 = vpop.f32.mrb[0].mxu0
        %960 = vmatprep.mubr.f32.mxu0 0.0
        %961 = vmatmul.mubr.f32.gmra.mrb[0].mxu0 %v834
        %v962 = vpop.f32.mrb[0].mxu0
        %v963 = vadd.f32 0.0, %v962
        %v964 = vpop.f32.mrb[0].mxu0
        %965 = vmatprep.mubr.f32.mxu0 0.0
        %966 = vmatmul.mubr.f32.gmra.mrb[0].mxu0 %v837
        %v967 = vpop.f32.mrb[0].mxu0
        %v968 = vadd.f32 0.0, %v967
        %v969 = vpop.f32.mrb[0].mxu0
        %970 = vmatprep.mubr.f32.mxu0 0.0
        %971 = vmatmul.mubr.f32.gmra.mrb[0].mxu0 %v840
        %v972 = vpop.f32.mrb[0].mxu0
        %v973 = vadd.f32 0.0, %v972
        %v974 = vpop.f32.mrb[0].mxu0
        %975 = vmatprep.mubr.f32.mxu0 0.0
        %976 = vmatmul.mubr.f32.gmra.mrb[0].mxu0 %v843
        %v977 = vpop.f32.mrb[0].mxu0
        %v978 = vadd.f32 0.0, %v977
        %v979 = vpop.f32.mrb[0].mxu0
        %980 = vmatprep.mubr.f32.mxu0 0.0
        %981 = vmatmul.mubr.f32.gmra.mrb[0].mxu0 %v846
        %v982 = vpop.f32.mrb[0].mxu0
        %v983 = vadd.f32 0.0, %v982
        %v984 = vpop.f32.mrb[0].mxu0
        %985 = vmatprep.mubr.f32.mxu0 0.0
        %986 = vmatmul.mubr.f32.gmra.mrb[0].mxu0 %v849
        %v987 = vpop.f32.mrb[0].mxu0
        %v988 = vadd.f32 0.0, %v987
        %v989 = vpop.f32.mrb[0].mxu0
        %990 = vmatprep.mubr.f32.mxu0 0.0
        %991 = vmatmul.mubr.f32.gmra.mrb[0].mxu0 %v852
        %v992 = vpop.f32.mrb[0].mxu0
        %v993 = vadd.f32 0.0, %v992
        %v994 = vpop.f32.mrb[0].mxu0
        %995 = vmatprep.mubr.f32.mxu0 0.0
        %996 = vmatmul.mubr.f32.gmra.mrb[0].mxu0 %v855
        %v997 = vpop.f32.mrb[0].mxu0
        %v998 = vadd.f32 0.0, %v997
        %v999 = vpop.f32.mrb[0].mxu0
        %1000 = vmatprep.mubr.f32.mxu0 0.0
        %1001 = vmatmul.mubr.f32.gmra.mrb[0].mxu0 %v858
        %v1002 = vpop.f32.mrb[0].mxu0
        %v1003 = vadd.f32 0.0, %v1002
        %v1004 = vpop.f32.mrb[0].mxu0
        %1005 = vmatprep.mubr.f32.mxu0 0.0
        %1006 = vmatmul.mubr.f32.gmra.mrb[0].mxu0 %v861
        %v1007 = vpop.f32.mrb[0].mxu0
        %v1008 = vadd.f32 0.0, %v1007
        %v1009 = vpop.f32.mrb[0].mxu0
        %1010 = vdwg.mxu0
        %v1011 = vmul.f32 %v933, 2.0
        %v1012 = vmul.f32 %v938, 2.0
        %v1013 = vmul.f32 %v943, 2.0
        %v1014 = vmul.f32 %v948, 2.0
        %v1015 = vmul.f32 %v953, 2.0
        %v1016 = vmul.f32 %v958, 2.0
        %v1017 = vmul.f32 %v963, 2.0
        %v1018 = vmul.f32 %v968, 2.0
        %v1019 = vmul.f32 %v973, 2.0
        %v1020 = vmul.f32 %v978, 2.0
        %v1021 = vmul.f32 %v983, 2.0
        %v1022 = vmul.f32 %v988, 2.0
        %v1023 = vmul.f32 %v993, 2.0
        %v1024 = vmul.f32 %v998, 2.0
        %v1025 = vmul.f32 %v1003, 2.0
        %v1026 = vmul.f32 %v1008, 2.0
        %v1027 = vsub.f32 %v799, %v1011
        %v1028 = vsub.f32 %v800, %v1012
        %v1029 = vsub.f32 %v801, %v1013
        %v1030 = vsub.f32 %v802, %v1014
        %v1031 = vsub.f32 %v803, %v1015
        %v1032 = vsub.f32 %v804, %v1016
        %v1033 = vsub.f32 %v805, %v1017
        %v1034 = vsub.f32 %v806, %v1018
        %v1035 = vsub.f32 %v807, %v1019
        %v1036 = vsub.f32 %v808, %v1020
        %v1037 = vsub.f32 %v809, %v1021
        %v1038 = vsub.f32 %v810, %v1022
        %v1039 = vsub.f32 %v811, %v1023
        %v1040 = vsub.f32 %v812, %v1024
        %v1041 = vsub.f32 %v813, %v1025
        %v1042 = vsub.f32 %v814, %v1026
        %v1043 = vmax.f32 %v777, 0.0
        %v1044 = vmax.f32 %v778, 0.0
        %v1045 = vmax.f32 %v779, 0.0
        %v1046 = vmax.f32 %v780, 0.0
        %v1047 = vmax.f32 %v781, 0.0
        %v1048 = vmax.f32 %v782, 0.0
        %v1049 = vmax.f32 %v783, 0.0
        %v1050 = vmax.f32 %v784, 0.0
        %v1051 = vmax.f32 %v785, 0.0
        %v1052 = vmax.f32 %v786, 0.0
        %v1053 = vmax.f32 %v787, 0.0
        %v1054 = vmax.f32 %v788, 0.0
        %v1055 = vmax.f32 %v789, 0.0
        %v1056 = vmax.f32 %v790, 0.0
        %v1057 = vmax.f32 %v791, 0.0
        %v1058 = vmax.f32 %v792, 0.0
        %v1059 = vmax.f32 %v1027, 0.0
        %v1060 = vmax.f32 %v1028, 0.0
        %v1061 = vmax.f32 %v1029, 0.0
        %v1062 = vmax.f32 %v1030, 0.0
        %v1063 = vmax.f32 %v1031, 0.0
        %v1064 = vmax.f32 %v1032, 0.0
        %v1065 = vmax.f32 %v1033, 0.0
        %v1066 = vmax.f32 %v1034, 0.0
        %v1067 = vmax.f32 %v1035, 0.0
        %v1068 = vmax.f32 %v1036, 0.0
        %v1069 = vmax.f32 %v1037, 0.0
        %v1070 = vmax.f32 %v1038, 0.0
        %v1071 = vmax.f32 %v1039, 0.0
        %v1072 = vmax.f32 %v1040, 0.0
        %v1073 = vmax.f32 %v1041, 0.0
        %v1074 = vmax.f32 %v1042, 0.0
        %v1075 = vrsqrt.pop %v1043
        %v1076 = vmul.f32 %v1043, %v1075
        %vm1077 = vcmp.eq.f32.partialorder %v1043, inf
        %v1078 = vsel %vm1077, %v1043, %v1076
        %vm1079 = vcmp.eq.f32.partialorder %v1043, 0.0
        %v1080 = vand.u32 %v1043, 2147483648
        %v1081 = vsel %vm1079, %v1080, %v1078
        %v1082 = vrsqrt.pop %v1044
        %v1083 = vmul.f32 %v1044, %v1082
        %vm1084 = vcmp.eq.f32.partialorder %v1044, inf
        %v1085 = vsel %vm1084, %v1044, %v1083
        %vm1086 = vcmp.eq.f32.partialorder %v1044, 0.0
        %v1087 = vand.u32 %v1044, 2147483648
        %v1088 = vsel %vm1086, %v1087, %v1085
        %v1089 = vrsqrt.pop %v1045
        %v1090 = vmul.f32 %v1045, %v1089
        %vm1091 = vcmp.eq.f32.partialorder %v1045, inf
        %v1092 = vsel %vm1091, %v1045, %v1090
        %vm1093 = vcmp.eq.f32.partialorder %v1045, 0.0
        %v1094 = vand.u32 %v1045, 2147483648
        %v1095 = vsel %vm1093, %v1094, %v1092
        %v1096 = vrsqrt.pop %v1046
        %v1097 = vmul.f32 %v1046, %v1096
        %vm1098 = vcmp.eq.f32.partialorder %v1046, inf
        %v1099 = vsel %vm1098, %v1046, %v1097
        %vm1100 = vcmp.eq.f32.partialorder %v1046, 0.0
        %v1101 = vand.u32 %v1046, 2147483648
        %v1102 = vsel %vm1100, %v1101, %v1099
        %v1103 = vrsqrt.pop %v1047
        %v1104 = vmul.f32 %v1047, %v1103
        %vm1105 = vcmp.eq.f32.partialorder %v1047, inf
        %v1106 = vsel %vm1105, %v1047, %v1104
        %vm1107 = vcmp.eq.f32.partialorder %v1047, 0.0
        %v1108 = vand.u32 %v1047, 2147483648
        %v1109 = vsel %vm1107, %v1108, %v1106
        %v1110 = vrsqrt.pop %v1048
        %v1111 = vmul.f32 %v1048, %v1110
        %vm1112 = vcmp.eq.f32.partialorder %v1048, inf
        %v1113 = vsel %vm1112, %v1048, %v1111
        %vm1114 = vcmp.eq.f32.partialorder %v1048, 0.0
        %v1115 = vand.u32 %v1048, 2147483648
        %v1116 = vsel %vm1114, %v1115, %v1113
        %v1117 = vrsqrt.pop %v1049
        %v1118 = vmul.f32 %v1049, %v1117
        %vm1119 = vcmp.eq.f32.partialorder %v1049, inf
        %v1120 = vsel %vm1119, %v1049, %v1118
        %vm1121 = vcmp.eq.f32.partialorder %v1049, 0.0
        %v1122 = vand.u32 %v1049, 2147483648
        %v1123 = vsel %vm1121, %v1122, %v1120
        %v1124 = vrsqrt.pop %v1050
        %v1125 = vmul.f32 %v1050, %v1124
        %vm1126 = vcmp.eq.f32.partialorder %v1050, inf
        %v1127 = vsel %vm1126, %v1050, %v1125
        %vm1128 = vcmp.eq.f32.partialorder %v1050, 0.0
        %v1129 = vand.u32 %v1050, 2147483648
        %v1130 = vsel %vm1128, %v1129, %v1127
        %v1131 = vrsqrt.pop %v1051
        %v1132 = vmul.f32 %v1051, %v1131
        %vm1133 = vcmp.eq.f32.partialorder %v1051, inf
        %v1134 = vsel %vm1133, %v1051, %v1132
        %vm1135 = vcmp.eq.f32.partialorder %v1051, 0.0
        %v1136 = vand.u32 %v1051, 2147483648
        %v1137 = vsel %vm1135, %v1136, %v1134
        %v1138 = vrsqrt.pop %v1052
        %v1139 = vmul.f32 %v1052, %v1138
        %vm1140 = vcmp.eq.f32.partialorder %v1052, inf
        %v1141 = vsel %vm1140, %v1052, %v1139
        %vm1142 = vcmp.eq.f32.partialorder %v1052, 0.0
        %v1143 = vand.u32 %v1052, 2147483648
        %v1144 = vsel %vm1142, %v1143, %v1141
        %v1145 = vrsqrt.pop %v1053
        %v1146 = vmul.f32 %v1053, %v1145
        %vm1147 = vcmp.eq.f32.partialorder %v1053, inf
        %v1148 = vsel %vm1147, %v1053, %v1146
        %vm1149 = vcmp.eq.f32.partialorder %v1053, 0.0
        %v1150 = vand.u32 %v1053, 2147483648
        %v1151 = vsel %vm1149, %v1150, %v1148
        %v1152 = vrsqrt.pop %v1054
        %v1153 = vmul.f32 %v1054, %v1152
        %vm1154 = vcmp.eq.f32.partialorder %v1054, inf
        %v1155 = vsel %vm1154, %v1054, %v1153
        %vm1156 = vcmp.eq.f32.partialorder %v1054, 0.0
        %v1157 = vand.u32 %v1054, 2147483648
        %v1158 = vsel %vm1156, %v1157, %v1155
        %v1159 = vrsqrt.pop %v1055
        %v1160 = vmul.f32 %v1055, %v1159
        %vm1161 = vcmp.eq.f32.partialorder %v1055, inf
        %v1162 = vsel %vm1161, %v1055, %v1160
        %vm1163 = vcmp.eq.f32.partialorder %v1055, 0.0
        %v1164 = vand.u32 %v1055, 2147483648
        %v1165 = vsel %vm1163, %v1164, %v1162
        %v1166 = vrsqrt.pop %v1056
        %v1167 = vmul.f32 %v1056, %v1166
        %vm1168 = vcmp.eq.f32.partialorder %v1056, inf
        %v1169 = vsel %vm1168, %v1056, %v1167
        %vm1170 = vcmp.eq.f32.partialorder %v1056, 0.0
        %v1171 = vand.u32 %v1056, 2147483648
        %v1172 = vsel %vm1170, %v1171, %v1169
        %v1173 = vrsqrt.pop %v1057
        %v1174 = vmul.f32 %v1057, %v1173
        %vm1175 = vcmp.eq.f32.partialorder %v1057, inf
        %v1176 = vsel %vm1175, %v1057, %v1174
        %vm1177 = vcmp.eq.f32.partialorder %v1057, 0.0
        %v1178 = vand.u32 %v1057, 2147483648
        %v1179 = vsel %vm1177, %v1178, %v1176
        %v1180 = vrsqrt.pop %v1058
        %v1181 = vmul.f32 %v1058, %v1180
        %vm1182 = vcmp.eq.f32.partialorder %v1058, inf
        %v1183 = vsel %vm1182, %v1058, %v1181
        %vm1184 = vcmp.eq.f32.partialorder %v1058, 0.0
        %v1185 = vand.u32 %v1058, 2147483648
        %v1186 = vsel %vm1184, %v1185, %v1183
        %v1187 = vrsqrt.pop %v1059
        %v1188 = vmul.f32 %v1059, %v1187
        %vm1189 = vcmp.eq.f32.partialorder %v1059, inf
        %v1190 = vsel %vm1189, %v1059, %v1188
        %vm1191 = vcmp.eq.f32.partialorder %v1059, 0.0
        %v1192 = vand.u32 %v1059, 2147483648
        %v1193 = vsel %vm1191, %v1192, %v1190
        %v1194 = vrsqrt.pop %v1060
        %v1195 = vmul.f32 %v1060, %v1194
        %vm1196 = vcmp.eq.f32.partialorder %v1060, inf
        %v1197 = vsel %vm1196, %v1060, %v1195
        %vm1198 = vcmp.eq.f32.partialorder %v1060, 0.0
        %v1199 = vand.u32 %v1060, 2147483648
        %v1200 = vsel %vm1198, %v1199, %v1197
        %v1201 = vrsqrt.pop %v1061
        %v1202 = vmul.f32 %v1061, %v1201
        %vm1203 = vcmp.eq.f32.partialorder %v1061, inf
        %v1204 = vsel %vm1203, %v1061, %v1202
        %vm1205 = vcmp.eq.f32.partialorder %v1061, 0.0
        %v1206 = vand.u32 %v1061, 2147483648
        %v1207 = vsel %vm1205, %v1206, %v1204
        %v1208 = vrsqrt.pop %v1062
        %v1209 = vmul.f32 %v1062, %v1208
        %vm1210 = vcmp.eq.f32.partialorder %v1062, inf
        %v1211 = vsel %vm1210, %v1062, %v1209
        %vm1212 = vcmp.eq.f32.partialorder %v1062, 0.0
        %v1213 = vand.u32 %v1062, 2147483648
        %v1214 = vsel %vm1212, %v1213, %v1211
        %v1215 = vrsqrt.pop %v1063
        %v1216 = vmul.f32 %v1063, %v1215
        %vm1217 = vcmp.eq.f32.partialorder %v1063, inf
        %v1218 = vsel %vm1217, %v1063, %v1216
        %vm1219 = vcmp.eq.f32.partialorder %v1063, 0.0
        %v1220 = vand.u32 %v1063, 2147483648
        %v1221 = vsel %vm1219, %v1220, %v1218
        %v1222 = vrsqrt.pop %v1064
        %v1223 = vmul.f32 %v1064, %v1222
        %vm1224 = vcmp.eq.f32.partialorder %v1064, inf
        %v1225 = vsel %vm1224, %v1064, %v1223
        %vm1226 = vcmp.eq.f32.partialorder %v1064, 0.0
        %v1227 = vand.u32 %v1064, 2147483648
        %v1228 = vsel %vm1226, %v1227, %v1225
        %v1229 = vrsqrt.pop %v1065
        %v1230 = vmul.f32 %v1065, %v1229
        %vm1231 = vcmp.eq.f32.partialorder %v1065, inf
        %v1232 = vsel %vm1231, %v1065, %v1230
        %vm1233 = vcmp.eq.f32.partialorder %v1065, 0.0
        %v1234 = vand.u32 %v1065, 2147483648
        %v1235 = vsel %vm1233, %v1234, %v1232
        %v1236 = vrsqrt.pop %v1066
        %v1237 = vmul.f32 %v1066, %v1236
        %vm1238 = vcmp.eq.f32.partialorder %v1066, inf
        %v1239 = vsel %vm1238, %v1066, %v1237
        %vm1240 = vcmp.eq.f32.partialorder %v1066, 0.0
        %v1241 = vand.u32 %v1066, 2147483648
        %v1242 = vsel %vm1240, %v1241, %v1239
        %v1243 = vrsqrt.pop %v1067
        %v1244 = vmul.f32 %v1067, %v1243
        %vm1245 = vcmp.eq.f32.partialorder %v1067, inf
        %v1246 = vsel %vm1245, %v1067, %v1244
        %vm1247 = vcmp.eq.f32.partialorder %v1067, 0.0
        %v1248 = vand.u32 %v1067, 2147483648
        %v1249 = vsel %vm1247, %v1248, %v1246
        %v1250 = vrsqrt.pop %v1068
        %v1251 = vmul.f32 %v1068, %v1250
        %vm1252 = vcmp.eq.f32.partialorder %v1068, inf
        %v1253 = vsel %vm1252, %v1068, %v1251
        %vm1254 = vcmp.eq.f32.partialorder %v1068, 0.0
        %v1255 = vand.u32 %v1068, 2147483648
        %v1256 = vsel %vm1254, %v1255, %v1253
        %v1257 = vrsqrt.pop %v1069
        %v1258 = vmul.f32 %v1069, %v1257
        %vm1259 = vcmp.eq.f32.partialorder %v1069, inf
        %v1260 = vsel %vm1259, %v1069, %v1258
        %vm1261 = vcmp.eq.f32.partialorder %v1069, 0.0
        %v1262 = vand.u32 %v1069, 2147483648
        %v1263 = vsel %vm1261, %v1262, %v1260
        %v1264 = vrsqrt.pop %v1070
        %v1265 = vmul.f32 %v1070, %v1264
        %vm1266 = vcmp.eq.f32.partialorder %v1070, inf
        %v1267 = vsel %vm1266, %v1070, %v1265
        %vm1268 = vcmp.eq.f32.partialorder %v1070, 0.0
        %v1269 = vand.u32 %v1070, 2147483648
        %v1270 = vsel %vm1268, %v1269, %v1267
        %v1271 = vrsqrt.pop %v1071
        %v1272 = vmul.f32 %v1071, %v1271
        %vm1273 = vcmp.eq.f32.partialorder %v1071, inf
        %v1274 = vsel %vm1273, %v1071, %v1272
        %vm1275 = vcmp.eq.f32.partialorder %v1071, 0.0
        %v1276 = vand.u32 %v1071, 2147483648
        %v1277 = vsel %vm1275, %v1276, %v1274
        %v1278 = vrsqrt.pop %v1072
        %v1279 = vmul.f32 %v1072, %v1278
        %vm1280 = vcmp.eq.f32.partialorder %v1072, inf
        %v1281 = vsel %vm1280, %v1072, %v1279
        %vm1282 = vcmp.eq.f32.partialorder %v1072, 0.0
        %v1283 = vand.u32 %v1072, 2147483648
        %v1284 = vsel %vm1282, %v1283, %v1281
        %v1285 = vrsqrt.pop %v1073
        %v1286 = vmul.f32 %v1073, %v1285
        %vm1287 = vcmp.eq.f32.partialorder %v1073, inf
        %v1288 = vsel %vm1287, %v1073, %v1286
        %vm1289 = vcmp.eq.f32.partialorder %v1073, 0.0
        %v1290 = vand.u32 %v1073, 2147483648
        %v1291 = vsel %vm1289, %v1290, %v1288
        %v1292 = vrsqrt.pop %v1074
        %v1293 = vmul.f32 %v1074, %v1292
        %vm1294 = vcmp.eq.f32.partialorder %v1074, inf
        %v1295 = vsel %vm1294, %v1074, %v1293
        %vm1296 = vcmp.eq.f32.partialorder %v1074, 0.0
        %v1297 = vand.u32 %v1074, 2147483648
        %v1298 = vsel %vm1296, %v1297, %v1295
        %v1299 = vadd.f32 %v1081, 1e-10
        %v1300 = vadd.f32 %v1088, 1e-10
        %v1301 = vadd.f32 %v1095, 1e-10
        %v1302 = vadd.f32 %v1102, 1e-10
        %v1303 = vadd.f32 %v1109, 1e-10
        %v1304 = vadd.f32 %v1116, 1e-10
        %v1305 = vadd.f32 %v1123, 1e-10
        %v1306 = vadd.f32 %v1130, 1e-10
        %v1307 = vadd.f32 %v1137, 1e-10
        %v1308 = vadd.f32 %v1144, 1e-10
        %v1309 = vadd.f32 %v1151, 1e-10
        %v1310 = vadd.f32 %v1158, 1e-10
        %v1311 = vadd.f32 %v1165, 1e-10
        %v1312 = vadd.f32 %v1172, 1e-10
        %v1313 = vadd.f32 %v1179, 1e-10
        %v1314 = vadd.f32 %v1186, 1e-10
        %v1315 = vrcp.pop %v1299
        %v1316 = vmul.f32 %v1193, %v1315
        %v1317 = vrcp.pop %v1300
        %v1318 = vmul.f32 %v1200, %v1317
        %v1319 = vrcp.pop %v1301
        %v1320 = vmul.f32 %v1207, %v1319
        %v1321 = vrcp.pop %v1302
        %v1322 = vmul.f32 %v1214, %v1321
        %v1323 = vrcp.pop %v1303
        %v1324 = vmul.f32 %v1221, %v1323
        %v1325 = vrcp.pop %v1304
        %v1326 = vmul.f32 %v1228, %v1325
        %v1327 = vrcp.pop %v1305
        %v1328 = vmul.f32 %v1235, %v1327
        %v1329 = vrcp.pop %v1306
        %v1330 = vmul.f32 %v1242, %v1329
        %v1331 = vrcp.pop %v1307
        %v1332 = vmul.f32 %v1249, %v1331
        %v1333 = vrcp.pop %v1308
        %v1334 = vmul.f32 %v1256, %v1333
        %v1335 = vrcp.pop %v1309
        %v1336 = vmul.f32 %v1263, %v1335
        %v1337 = vrcp.pop %v1310
        %v1338 = vmul.f32 %v1270, %v1337
        %v1339 = vrcp.pop %v1311
        %v1340 = vmul.f32 %v1277, %v1339
        %v1341 = vrcp.pop %v1312
        %v1342 = vmul.f32 %v1284, %v1341
        %v1343 = vrcp.pop %v1313
        %v1344 = vmul.f32 %v1291, %v1343
        %v1345 = vrcp.pop %v1314
        %v1346 = vmul.f32 %v1298, %v1345
        %v1347 = vsub.f32 %v1316, 1.0
        %v1348 = vsub.f32 %v1318, 1.0
        %v1349 = vsub.f32 %v1320, 1.0
        %v1350 = vsub.f32 %v1322, 1.0
        %v1351 = vsub.f32 %v1324, 1.0
        %v1352 = vsub.f32 %v1326, 1.0
        %v1353 = vsub.f32 %v1328, 1.0
        %v1354 = vsub.f32 %v1330, 1.0
        %v1355 = vsub.f32 %v1332, 1.0
        %v1356 = vsub.f32 %v1334, 1.0
        %v1357 = vsub.f32 %v1336, 1.0
        %v1358 = vsub.f32 %v1338, 1.0
        %v1359 = vsub.f32 %v1340, 1.0
        %v1360 = vsub.f32 %v1342, 1.0
        %v1361 = vsub.f32 %v1344, 1.0
        %v1362 = vsub.f32 %v1346, 1.0
        %v1363 = vmax.f32 %v1347, 0.0
        %v1364 = vmax.f32 %v1348, 0.0
        %v1365 = vmax.f32 %v1349, 0.0
        %v1366 = vmax.f32 %v1350, 0.0
        %v1367 = vmax.f32 %v1351, 0.0
        %v1368 = vmax.f32 %v1352, 0.0
        %v1369 = vmax.f32 %v1353, 0.0
        %v1370 = vmax.f32 %v1354, 0.0
        %v1371 = vmax.f32 %v1355, 0.0
        %v1372 = vmax.f32 %v1356, 0.0
        %v1373 = vmax.f32 %v1357, 0.0
        %v1374 = vmax.f32 %v1358, 0.0
        %v1375 = vmax.f32 %v1359, 0.0
        %v1376 = vmax.f32 %v1360, 0.0
        %v1377 = vmax.f32 %v1361, 0.0
        %v1378 = vmax.f32 %v1362, 0.0
        %v1379 = vlaneseq
        %v1380 = vand.u32 %v1379, 127
        %s1381 = smul.u32 %s24, 128
        %v1382 = vlaneseq
        %v1383 = vshrl.u32 %v1382, 7
        %v1384 = vadd.s32 %v1383, 8
        %v1385 = vadd.s32 %v1383, 16
        %v1386 = vadd.s32 %v1383, 24
        %v1387 = vadd.s32 %v1383, 32
        %v1388 = vadd.s32 %v1383, 40
        %v1389 = vadd.s32 %v1383, 48
        %v1390 = vadd.s32 %v1383, 56
        %v1391 = vadd.s32 %v1383, 64
        %v1392 = vadd.s32 %v1383, 72
        %v1393 = vadd.s32 %v1383, 80
        %v1394 = vadd.s32 %v1383, 88
        %v1395 = vadd.s32 %v1383, 96
        %v1396 = vadd.s32 %v1383, 104
        %v1397 = vadd.s32 %v1383, 112
        %v1398 = vadd.s32 %v1383, 120
        %v1399 = vstv %s1381
        %v1400 = vadd.s32 %v1399, %v1383
        %v1401 = vadd.s32 %v1399, %v1384
        %v1402 = vadd.s32 %v1399, %v1385
        %v1403 = vadd.s32 %v1399, %v1386
        %v1404 = vadd.s32 %v1399, %v1387
        %v1405 = vadd.s32 %v1399, %v1388
        %v1406 = vadd.s32 %v1399, %v1389
        %v1407 = vadd.s32 %v1399, %v1390
        %v1408 = vadd.s32 %v1399, %v1391
        %v1409 = vadd.s32 %v1399, %v1392
        %v1410 = vadd.s32 %v1399, %v1393
        %v1411 = vadd.s32 %v1399, %v1394
        %v1412 = vadd.s32 %v1399, %v1395
        %v1413 = vadd.s32 %v1399, %v1396
        %v1414 = vadd.s32 %v1399, %v1397
        %v1415 = vadd.s32 %v1399, %v1398
        %vm1416 = vcmp.eq.s32.totalorder %v1380, %v1400
        %vm1417 = vcmp.eq.s32.totalorder %v1380, %v1401
        %vm1418 = vcmp.eq.s32.totalorder %v1380, %v1402
        %vm1419 = vcmp.eq.s32.totalorder %v1380, %v1403
        %vm1420 = vcmp.eq.s32.totalorder %v1380, %v1404
        %vm1421 = vcmp.eq.s32.totalorder %v1380, %v1405
        %vm1422 = vcmp.eq.s32.totalorder %v1380, %v1406
        %vm1423 = vcmp.eq.s32.totalorder %v1380, %v1407
        %vm1424 = vcmp.eq.s32.totalorder %v1380, %v1408
        %vm1425 = vcmp.eq.s32.totalorder %v1380, %v1409
        %vm1426 = vcmp.eq.s32.totalorder %v1380, %v1410
        %vm1427 = vcmp.eq.s32.totalorder %v1380, %v1411
        %vm1428 = vcmp.eq.s32.totalorder %v1380, %v1412
        %vm1429 = vcmp.eq.s32.totalorder %v1380, %v1413
        %vm1430 = vcmp.eq.s32.totalorder %v1380, %v1414
        %vm1431 = vcmp.eq.s32.totalorder %v1380, %v1415
        %v1432 = vsel %vm1416, 1e+30, %v1043
        %v1433 = vsel %vm1417, 1e+30, %v1044
        %v1434 = vsel %vm1418, 1e+30, %v1045
        %v1435 = vsel %vm1419, 1e+30, %v1046
        %v1436 = vsel %vm1420, 1e+30, %v1047
        %v1437 = vsel %vm1421, 1e+30, %v1048
        %v1438 = vsel %vm1422, 1e+30, %v1049
        %v1439 = vsel %vm1423, 1e+30, %v1050
        %v1440 = vsel %vm1424, 1e+30, %v1051
        %v1441 = vsel %vm1425, 1e+30, %v1052
        %v1442 = vsel %vm1426, 1e+30, %v1053
        %v1443 = vsel %vm1427, 1e+30, %v1054
        %v1444 = vsel %vm1428, 1e+30, %v1055
        %v1445 = vsel %vm1429, 1e+30, %v1056
        %v1446 = vsel %vm1430, 1e+30, %v1057
        %v1447 = vsel %vm1431, 1e+30, %v1058
        %1448 = vmin.xlane.f32.xlu0 %v1432
        %v1449 = vpop.xlane.xlu0 %1448
        %1450 = vmin.xlane.f32.xlu0 %v1433
        %v1451 = vpop.xlane.xlu0 %1450
        %1452 = vmin.xlane.f32.xlu0 %v1434
        %v1453 = vpop.xlane.xlu0 %1452
        %1454 = vmin.xlane.f32.xlu0 %v1435
        %v1455 = vpop.xlane.xlu0 %1454
        %1456 = vmin.xlane.f32.xlu0 %v1436
        %v1457 = vpop.xlane.xlu0 %1456
        %1458 = vmin.xlane.f32.xlu0 %v1437
        %v1459 = vpop.xlane.xlu0 %1458
        %1460 = vmin.xlane.f32.xlu0 %v1438
        %v1461 = vpop.xlane.xlu0 %1460
        %1462 = vmin.xlane.f32.xlu0 %v1439
        %v1463 = vpop.xlane.xlu0 %1462
        %1464 = vmin.xlane.f32.xlu0 %v1440
        %v1465 = vpop.xlane.xlu0 %1464
        %1466 = vmin.xlane.f32.xlu0 %v1441
        %v1467 = vpop.xlane.xlu0 %1466
        %1468 = vmin.xlane.f32.xlu0 %v1442
        %v1469 = vpop.xlane.xlu0 %1468
        %1470 = vmin.xlane.f32.xlu0 %v1443
        %v1471 = vpop.xlane.xlu0 %1470
        %1472 = vmin.xlane.f32.xlu0 %v1444
        %v1473 = vpop.xlane.xlu0 %1472
        %1474 = vmin.xlane.f32.xlu0 %v1445
        %v1475 = vpop.xlane.xlu0 %1474
        %1476 = vmin.xlane.f32.xlu0 %v1446
        %v1477 = vpop.xlane.xlu0 %1476
        %1478 = vmin.xlane.f32.xlu0 %v1447
        %v1479 = vpop.xlane.xlu0 %1478
        %vm1480 = vcmp.eq.f32.partialorder %v1432, %v1449
        %vm1481 = vcmp.eq.f32.partialorder %v1433, %v1451
        %vm1482 = vcmp.eq.f32.partialorder %v1434, %v1453
        %vm1483 = vcmp.eq.f32.partialorder %v1435, %v1455
        %vm1484 = vcmp.eq.f32.partialorder %v1436, %v1457
        %vm1485 = vcmp.eq.f32.partialorder %v1437, %v1459
        %vm1486 = vcmp.eq.f32.partialorder %v1438, %v1461
        %vm1487 = vcmp.eq.f32.partialorder %v1439, %v1463
        %vm1488 = vcmp.eq.f32.partialorder %v1440, %v1465
        %vm1489 = vcmp.eq.f32.partialorder %v1441, %v1467
        %vm1490 = vcmp.eq.f32.partialorder %v1442, %v1469
        %vm1491 = vcmp.eq.f32.partialorder %v1443, %v1471
        %vm1492 = vcmp.eq.f32.partialorder %v1444, %v1473
        %vm1493 = vcmp.eq.f32.partialorder %v1445, %v1475
        %vm1494 = vcmp.eq.f32.partialorder %v1446, %v1477
        %vm1495 = vcmp.eq.f32.partialorder %v1447, %v1479
        %v1496 = vsel %vm1480, %v1380, 128
        %v1497 = vsel %vm1481, %v1380, 128
        %v1498 = vsel %vm1482, %v1380, 128
        %v1499 = vsel %vm1483, %v1380, 128
        %v1500 = vsel %vm1484, %v1380, 128
        %v1501 = vsel %vm1485, %v1380, 128
        %v1502 = vsel %vm1486, %v1380, 128
        %v1503 = vsel %vm1487, %v1380, 128
        %v1504 = vsel %vm1488, %v1380, 128
        %v1505 = vsel %vm1489, %v1380, 128
        %v1506 = vsel %vm1490, %v1380, 128
        %v1507 = vsel %vm1491, %v1380, 128
        %v1508 = vsel %vm1492, %v1380, 128
        %v1509 = vsel %vm1493, %v1380, 128
        %v1510 = vsel %vm1494, %v1380, 128
        %v1511 = vsel %vm1495, %v1380, 128
        %v1512 = vand.u32 %v1496, 65535
        %v1513 = vshra.s32 %v1496, 16
        %v1514 = vcvt.s32.f32 %v1512
        %v1515 = vcvt.s32.f32 %v1513
        %1516 = vmin.xlane.f32.xlu0 %v1515
        %v1517 = vpop.xlane.xlu0 %1516
        %vm1518 = vcmp.eq.f32.partialorder %v1515, %v1517
        %v1519 = vsel %vm1518, %v1514, inf
        %1520 = vmin.xlane.f32.xlu0 %v1519
        %v1521 = vpop.xlane.xlu0 %1520
        %v1522 = vcvt.f32.s32 %v1521
        %v1523 = vcvt.f32.s32 %v1517
        %v1524 = vshll.u32 %v1523, 16
        %v1525 = vadd.s32 %v1524, %v1522
        %v1526 = vand.u32 %v1497, 65535
        %v1527 = vshra.s32 %v1497, 16
        %v1528 = vcvt.s32.f32 %v1526
        %v1529 = vcvt.s32.f32 %v1527
        %1530 = vmin.xlane.f32.xlu0 %v1529
        %v1531 = vpop.xlane.xlu0 %1530
        %vm1532 = vcmp.eq.f32.partialorder %v1529, %v1531
        %v1533 = vsel %vm1532, %v1528, inf
        %1534 = vmin.xlane.f32.xlu0 %v1533
        %v1535 = vpop.xlane.xlu0 %1534
        %v1536 = vcvt.f32.s32 %v1535
        %v1537 = vcvt.f32.s32 %v1531
        %v1538 = vshll.u32 %v1537, 16
        %v1539 = vadd.s32 %v1538, %v1536
        %v1540 = vand.u32 %v1498, 65535
        %v1541 = vshra.s32 %v1498, 16
        %v1542 = vcvt.s32.f32 %v1540
        %v1543 = vcvt.s32.f32 %v1541
        %1544 = vmin.xlane.f32.xlu0 %v1543
        %v1545 = vpop.xlane.xlu0 %1544
        %vm1546 = vcmp.eq.f32.partialorder %v1543, %v1545
        %v1547 = vsel %vm1546, %v1542, inf
        %1548 = vmin.xlane.f32.xlu0 %v1547
        %v1549 = vpop.xlane.xlu0 %1548
        %v1550 = vcvt.f32.s32 %v1549
        %v1551 = vcvt.f32.s32 %v1545
        %v1552 = vshll.u32 %v1551, 16
        %v1553 = vadd.s32 %v1552, %v1550
        %v1554 = vand.u32 %v1499, 65535
        %v1555 = vshra.s32 %v1499, 16
        %v1556 = vcvt.s32.f32 %v1554
        %v1557 = vcvt.s32.f32 %v1555
        %1558 = vmin.xlane.f32.xlu0 %v1557
        %v1559 = vpop.xlane.xlu0 %1558
        %vm1560 = vcmp.eq.f32.partialorder %v1557, %v1559
        %v1561 = vsel %vm1560, %v1556, inf
        %1562 = vmin.xlane.f32.xlu0 %v1561
        %v1563 = vpop.xlane.xlu0 %1562
        %v1564 = vcvt.f32.s32 %v1563
        %v1565 = vcvt.f32.s32 %v1559
        %v1566 = vshll.u32 %v1565, 16
        %v1567 = vadd.s32 %v1566, %v1564
        %v1568 = vand.u32 %v1500, 65535
        %v1569 = vshra.s32 %v1500, 16
        %v1570 = vcvt.s32.f32 %v1568
        %v1571 = vcvt.s32.f32 %v1569
        %1572 = vmin.xlane.f32.xlu0 %v1571
        %v1573 = vpop.xlane.xlu0 %1572
        %vm1574 = vcmp.eq.f32.partialorder %v1571, %v1573
        %v1575 = vsel %vm1574, %v1570, inf
        %1576 = vmin.xlane.f32.xlu0 %v1575
        %v1577 = vpop.xlane.xlu0 %1576
        %v1578 = vcvt.f32.s32 %v1577
        %v1579 = vcvt.f32.s32 %v1573
        %v1580 = vshll.u32 %v1579, 16
        %v1581 = vadd.s32 %v1580, %v1578
        %v1582 = vand.u32 %v1501, 65535
        %v1583 = vshra.s32 %v1501, 16
        %v1584 = vcvt.s32.f32 %v1582
        %v1585 = vcvt.s32.f32 %v1583
        %1586 = vmin.xlane.f32.xlu0 %v1585
        %v1587 = vpop.xlane.xlu0 %1586
        %vm1588 = vcmp.eq.f32.partialorder %v1585, %v1587
        %v1589 = vsel %vm1588, %v1584, inf
        %1590 = vmin.xlane.f32.xlu0 %v1589
        %v1591 = vpop.xlane.xlu0 %1590
        %v1592 = vcvt.f32.s32 %v1591
        %v1593 = vcvt.f32.s32 %v1587
        %v1594 = vshll.u32 %v1593, 16
        %v1595 = vadd.s32 %v1594, %v1592
        %v1596 = vand.u32 %v1502, 65535
        %v1597 = vshra.s32 %v1502, 16
        %v1598 = vcvt.s32.f32 %v1596
        %v1599 = vcvt.s32.f32 %v1597
        %1600 = vmin.xlane.f32.xlu0 %v1599
        %v1601 = vpop.xlane.xlu0 %1600
        %vm1602 = vcmp.eq.f32.partialorder %v1599, %v1601
        %v1603 = vsel %vm1602, %v1598, inf
        %1604 = vmin.xlane.f32.xlu0 %v1603
        %v1605 = vpop.xlane.xlu0 %1604
        %v1606 = vcvt.f32.s32 %v1605
        %v1607 = vcvt.f32.s32 %v1601
        %v1608 = vshll.u32 %v1607, 16
        %v1609 = vadd.s32 %v1608, %v1606
        %v1610 = vand.u32 %v1503, 65535
        %v1611 = vshra.s32 %v1503, 16
        %v1612 = vcvt.s32.f32 %v1610
        %v1613 = vcvt.s32.f32 %v1611
        %1614 = vmin.xlane.f32.xlu0 %v1613
        %v1615 = vpop.xlane.xlu0 %1614
        %vm1616 = vcmp.eq.f32.partialorder %v1613, %v1615
        %v1617 = vsel %vm1616, %v1612, inf
        %1618 = vmin.xlane.f32.xlu0 %v1617
        %v1619 = vpop.xlane.xlu0 %1618
        %v1620 = vcvt.f32.s32 %v1619
        %v1621 = vcvt.f32.s32 %v1615
        %v1622 = vshll.u32 %v1621, 16
        %v1623 = vadd.s32 %v1622, %v1620
        %v1624 = vand.u32 %v1504, 65535
        %v1625 = vshra.s32 %v1504, 16
        %v1626 = vcvt.s32.f32 %v1624
        %v1627 = vcvt.s32.f32 %v1625
        %1628 = vmin.xlane.f32.xlu0 %v1627
        %v1629 = vpop.xlane.xlu0 %1628
        %vm1630 = vcmp.eq.f32.partialorder %v1627, %v1629
        %v1631 = vsel %vm1630, %v1626, inf
        %1632 = vmin.xlane.f32.xlu0 %v1631
        %v1633 = vpop.xlane.xlu0 %1632
        %v1634 = vcvt.f32.s32 %v1633
        %v1635 = vcvt.f32.s32 %v1629
        %v1636 = vshll.u32 %v1635, 16
        %v1637 = vadd.s32 %v1636, %v1634
        %v1638 = vand.u32 %v1505, 65535
        %v1639 = vshra.s32 %v1505, 16
        %v1640 = vcvt.s32.f32 %v1638
        %v1641 = vcvt.s32.f32 %v1639
        %1642 = vmin.xlane.f32.xlu0 %v1641
        %v1643 = vpop.xlane.xlu0 %1642
        %vm1644 = vcmp.eq.f32.partialorder %v1641, %v1643
        %v1645 = vsel %vm1644, %v1640, inf
        %1646 = vmin.xlane.f32.xlu0 %v1645
        %v1647 = vpop.xlane.xlu0 %1646
        %v1648 = vcvt.f32.s32 %v1647
        %v1649 = vcvt.f32.s32 %v1643
        %v1650 = vshll.u32 %v1649, 16
        %v1651 = vadd.s32 %v1650, %v1648
        %v1652 = vand.u32 %v1506, 65535
        %v1653 = vshra.s32 %v1506, 16
        %v1654 = vcvt.s32.f32 %v1652
        %v1655 = vcvt.s32.f32 %v1653
        %1656 = vmin.xlane.f32.xlu0 %v1655
        %v1657 = vpop.xlane.xlu0 %1656
        %vm1658 = vcmp.eq.f32.partialorder %v1655, %v1657
        %v1659 = vsel %vm1658, %v1654, inf
        %1660 = vmin.xlane.f32.xlu0 %v1659
        %v1661 = vpop.xlane.xlu0 %1660
        %v1662 = vcvt.f32.s32 %v1661
        %v1663 = vcvt.f32.s32 %v1657
        %v1664 = vshll.u32 %v1663, 16
        %v1665 = vadd.s32 %v1664, %v1662
        %v1666 = vand.u32 %v1507, 65535
        %v1667 = vshra.s32 %v1507, 16
        %v1668 = vcvt.s32.f32 %v1666
        %v1669 = vcvt.s32.f32 %v1667
        %1670 = vmin.xlane.f32.xlu0 %v1669
        %v1671 = vpop.xlane.xlu0 %1670
        %vm1672 = vcmp.eq.f32.partialorder %v1669, %v1671
        %v1673 = vsel %vm1672, %v1668, inf
        %1674 = vmin.xlane.f32.xlu0 %v1673
        %v1675 = vpop.xlane.xlu0 %1674
        %v1676 = vcvt.f32.s32 %v1675
        %v1677 = vcvt.f32.s32 %v1671
        %v1678 = vshll.u32 %v1677, 16
        %v1679 = vadd.s32 %v1678, %v1676
        %v1680 = vand.u32 %v1508, 65535
        %v1681 = vshra.s32 %v1508, 16
        %v1682 = vcvt.s32.f32 %v1680
        %v1683 = vcvt.s32.f32 %v1681
        %1684 = vmin.xlane.f32.xlu0 %v1683
        %v1685 = vpop.xlane.xlu0 %1684
        %vm1686 = vcmp.eq.f32.partialorder %v1683, %v1685
        %v1687 = vsel %vm1686, %v1682, inf
        %1688 = vmin.xlane.f32.xlu0 %v1687
        %v1689 = vpop.xlane.xlu0 %1688
        %v1690 = vcvt.f32.s32 %v1689
        %v1691 = vcvt.f32.s32 %v1685
        %v1692 = vshll.u32 %v1691, 16
        %v1693 = vadd.s32 %v1692, %v1690
        %v1694 = vand.u32 %v1509, 65535
        %v1695 = vshra.s32 %v1509, 16
        %v1696 = vcvt.s32.f32 %v1694
        %v1697 = vcvt.s32.f32 %v1695
        %1698 = vmin.xlane.f32.xlu0 %v1697
        %v1699 = vpop.xlane.xlu0 %1698
        %vm1700 = vcmp.eq.f32.partialorder %v1697, %v1699
        %v1701 = vsel %vm1700, %v1696, inf
        %1702 = vmin.xlane.f32.xlu0 %v1701
        %v1703 = vpop.xlane.xlu0 %1702
        %v1704 = vcvt.f32.s32 %v1703
        %v1705 = vcvt.f32.s32 %v1699
        %v1706 = vshll.u32 %v1705, 16
        %v1707 = vadd.s32 %v1706, %v1704
        %v1708 = vand.u32 %v1510, 65535
        %v1709 = vshra.s32 %v1510, 16
        %v1710 = vcvt.s32.f32 %v1708
        %v1711 = vcvt.s32.f32 %v1709
        %1712 = vmin.xlane.f32.xlu0 %v1711
        %v1713 = vpop.xlane.xlu0 %1712
        %vm1714 = vcmp.eq.f32.partialorder %v1711, %v1713
        %v1715 = vsel %vm1714, %v1710, inf
        %1716 = vmin.xlane.f32.xlu0 %v1715
        %v1717 = vpop.xlane.xlu0 %1716
        %v1718 = vcvt.f32.s32 %v1717
        %v1719 = vcvt.f32.s32 %v1713
        %v1720 = vshll.u32 %v1719, 16
        %v1721 = vadd.s32 %v1720, %v1718
        %v1722 = vand.u32 %v1511, 65535
        %v1723 = vshra.s32 %v1511, 16
        %v1724 = vcvt.s32.f32 %v1722
        %v1725 = vcvt.s32.f32 %v1723
        %1726 = vmin.xlane.f32.xlu0 %v1725
        %v1727 = vpop.xlane.xlu0 %1726
        %vm1728 = vcmp.eq.f32.partialorder %v1725, %v1727
        %v1729 = vsel %vm1728, %v1724, inf
        %1730 = vmin.xlane.f32.xlu0 %v1729
        %v1731 = vpop.xlane.xlu0 %1730
        %v1732 = vcvt.f32.s32 %v1731
        %v1733 = vcvt.f32.s32 %v1727
        %v1734 = vshll.u32 %v1733, 16
        %v1735 = vadd.s32 %v1734, %v1732
        %vm1736 = vcmp.eq.s32.totalorder %v1380, %v1525
        %vm1737 = vcmp.eq.s32.totalorder %v1380, %v1539
        %vm1738 = vcmp.eq.s32.totalorder %v1380, %v1553
        %vm1739 = vcmp.eq.s32.totalorder %v1380, %v1567
        %vm1740 = vcmp.eq.s32.totalorder %v1380, %v1581
        %vm1741 = vcmp.eq.s32.totalorder %v1380, %v1595
        %vm1742 = vcmp.eq.s32.totalorder %v1380, %v1609
        %vm1743 = vcmp.eq.s32.totalorder %v1380, %v1623
        %vm1744 = vcmp.eq.s32.totalorder %v1380, %v1637
        %vm1745 = vcmp.eq.s32.totalorder %v1380, %v1651
        %vm1746 = vcmp.eq.s32.totalorder %v1380, %v1665
        %vm1747 = vcmp.eq.s32.totalorder %v1380, %v1679
        %vm1748 = vcmp.eq.s32.totalorder %v1380, %v1693
        %vm1749 = vcmp.eq.s32.totalorder %v1380, %v1707
        %vm1750 = vcmp.eq.s32.totalorder %v1380, %v1721
        %vm1751 = vcmp.eq.s32.totalorder %v1380, %v1735
        %v1752 = vsel %vm1736, 1e+30, %v1432
        %v1753 = vsel %vm1737, 1e+30, %v1433
        %v1754 = vsel %vm1738, 1e+30, %v1434
        %v1755 = vsel %vm1739, 1e+30, %v1435
        %v1756 = vsel %vm1740, 1e+30, %v1436
        %v1757 = vsel %vm1741, 1e+30, %v1437
        %v1758 = vsel %vm1742, 1e+30, %v1438
        %v1759 = vsel %vm1743, 1e+30, %v1439
        %v1760 = vsel %vm1744, 1e+30, %v1440
        %v1761 = vsel %vm1745, 1e+30, %v1441
        %v1762 = vsel %vm1746, 1e+30, %v1442
        %v1763 = vsel %vm1747, 1e+30, %v1443
        %v1764 = vsel %vm1748, 1e+30, %v1444
        %v1765 = vsel %vm1749, 1e+30, %v1445
        %v1766 = vsel %vm1750, 1e+30, %v1446
        %v1767 = vsel %vm1751, 1e+30, %v1447
        %1768 = vmin.xlane.f32.xlu0 %v1752
        %v1769 = vpop.xlane.xlu0 %1768
        %1770 = vmin.xlane.f32.xlu0 %v1753
        %v1771 = vpop.xlane.xlu0 %1770
        %1772 = vmin.xlane.f32.xlu0 %v1754
        %v1773 = vpop.xlane.xlu0 %1772
        %1774 = vmin.xlane.f32.xlu0 %v1755
        %v1775 = vpop.xlane.xlu0 %1774
        %1776 = vmin.xlane.f32.xlu0 %v1756
        %v1777 = vpop.xlane.xlu0 %1776
        %1778 = vmin.xlane.f32.xlu0 %v1757
        %v1779 = vpop.xlane.xlu0 %1778
        %1780 = vmin.xlane.f32.xlu0 %v1758
        %v1781 = vpop.xlane.xlu0 %1780
        %1782 = vmin.xlane.f32.xlu0 %v1759
        %v1783 = vpop.xlane.xlu0 %1782
        %1784 = vmin.xlane.f32.xlu0 %v1760
        %v1785 = vpop.xlane.xlu0 %1784
        %1786 = vmin.xlane.f32.xlu0 %v1761
        %v1787 = vpop.xlane.xlu0 %1786
        %1788 = vmin.xlane.f32.xlu0 %v1762
        %v1789 = vpop.xlane.xlu0 %1788
        %1790 = vmin.xlane.f32.xlu0 %v1763
        %v1791 = vpop.xlane.xlu0 %1790
        %1792 = vmin.xlane.f32.xlu0 %v1764
        %v1793 = vpop.xlane.xlu0 %1792
        %1794 = vmin.xlane.f32.xlu0 %v1765
        %v1795 = vpop.xlane.xlu0 %1794
        %1796 = vmin.xlane.f32.xlu0 %v1766
        %v1797 = vpop.xlane.xlu0 %1796
        %1798 = vmin.xlane.f32.xlu0 %v1767
        %v1799 = vpop.xlane.xlu0 %1798
        %vm1800 = vcmp.eq.f32.partialorder %v1752, %v1769
        %vm1801 = vcmp.eq.f32.partialorder %v1753, %v1771
        %vm1802 = vcmp.eq.f32.partialorder %v1754, %v1773
        %vm1803 = vcmp.eq.f32.partialorder %v1755, %v1775
        %vm1804 = vcmp.eq.f32.partialorder %v1756, %v1777
        %vm1805 = vcmp.eq.f32.partialorder %v1757, %v1779
        %vm1806 = vcmp.eq.f32.partialorder %v1758, %v1781
        %vm1807 = vcmp.eq.f32.partialorder %v1759, %v1783
        %vm1808 = vcmp.eq.f32.partialorder %v1760, %v1785
        %vm1809 = vcmp.eq.f32.partialorder %v1761, %v1787
        %vm1810 = vcmp.eq.f32.partialorder %v1762, %v1789
        %vm1811 = vcmp.eq.f32.partialorder %v1763, %v1791
        %vm1812 = vcmp.eq.f32.partialorder %v1764, %v1793
        %vm1813 = vcmp.eq.f32.partialorder %v1765, %v1795
        %vm1814 = vcmp.eq.f32.partialorder %v1766, %v1797
        %vm1815 = vcmp.eq.f32.partialorder %v1767, %v1799
        %v1816 = vsel %vm1800, %v1380, 128
        %v1817 = vsel %vm1801, %v1380, 128
        %v1818 = vsel %vm1802, %v1380, 128
        %v1819 = vsel %vm1803, %v1380, 128
        %v1820 = vsel %vm1804, %v1380, 128
        %v1821 = vsel %vm1805, %v1380, 128
        %v1822 = vsel %vm1806, %v1380, 128
        %v1823 = vsel %vm1807, %v1380, 128
        %v1824 = vsel %vm1808, %v1380, 128
        %v1825 = vsel %vm1809, %v1380, 128
        %v1826 = vsel %vm1810, %v1380, 128
        %v1827 = vsel %vm1811, %v1380, 128
        %v1828 = vsel %vm1812, %v1380, 128
        %v1829 = vsel %vm1813, %v1380, 128
        %v1830 = vsel %vm1814, %v1380, 128
        %v1831 = vsel %vm1815, %v1380, 128
        %v1832 = vand.u32 %v1816, 65535
        %v1833 = vshra.s32 %v1816, 16
        %v1834 = vcvt.s32.f32 %v1832
        %v1835 = vcvt.s32.f32 %v1833
        %1836 = vmin.xlane.f32.xlu0 %v1835
        %v1837 = vpop.xlane.xlu0 %1836
        %vm1838 = vcmp.eq.f32.partialorder %v1835, %v1837
        %v1839 = vsel %vm1838, %v1834, inf
        %1840 = vmin.xlane.f32.xlu0 %v1839
        %v1841 = vpop.xlane.xlu0 %1840
        %v1842 = vcvt.f32.s32 %v1841
        %v1843 = vcvt.f32.s32 %v1837
        %v1844 = vshll.u32 %v1843, 16
        %v1845 = vadd.s32 %v1844, %v1842
        %v1846 = vand.u32 %v1817, 65535
        %v1847 = vshra.s32 %v1817, 16
        %v1848 = vcvt.s32.f32 %v1846
        %v1849 = vcvt.s32.f32 %v1847
        %1850 = vmin.xlane.f32.xlu0 %v1849
        %v1851 = vpop.xlane.xlu0 %1850
        %vm1852 = vcmp.eq.f32.partialorder %v1849, %v1851
        %v1853 = vsel %vm1852, %v1848, inf
        %1854 = vmin.xlane.f32.xlu0 %v1853
        %v1855 = vpop.xlane.xlu0 %1854
        %v1856 = vcvt.f32.s32 %v1855
        %v1857 = vcvt.f32.s32 %v1851
        %v1858 = vshll.u32 %v1857, 16
        %v1859 = vadd.s32 %v1858, %v1856
        %v1860 = vand.u32 %v1818, 65535
        %v1861 = vshra.s32 %v1818, 16
        %v1862 = vcvt.s32.f32 %v1860
        %v1863 = vcvt.s32.f32 %v1861
        %1864 = vmin.xlane.f32.xlu0 %v1863
        %v1865 = vpop.xlane.xlu0 %1864
        %vm1866 = vcmp.eq.f32.partialorder %v1863, %v1865
        %v1867 = vsel %vm1866, %v1862, inf
        %1868 = vmin.xlane.f32.xlu0 %v1867
        %v1869 = vpop.xlane.xlu0 %1868
        %v1870 = vcvt.f32.s32 %v1869
        %v1871 = vcvt.f32.s32 %v1865
        %v1872 = vshll.u32 %v1871, 16
        %v1873 = vadd.s32 %v1872, %v1870
        %v1874 = vand.u32 %v1819, 65535
        %v1875 = vshra.s32 %v1819, 16
        %v1876 = vcvt.s32.f32 %v1874
        %v1877 = vcvt.s32.f32 %v1875
        %1878 = vmin.xlane.f32.xlu0 %v1877
        %v1879 = vpop.xlane.xlu0 %1878
        %vm1880 = vcmp.eq.f32.partialorder %v1877, %v1879
        %v1881 = vsel %vm1880, %v1876, inf
        %1882 = vmin.xlane.f32.xlu0 %v1881
        %v1883 = vpop.xlane.xlu0 %1882
        %v1884 = vcvt.f32.s32 %v1883
        %v1885 = vcvt.f32.s32 %v1879
        %v1886 = vshll.u32 %v1885, 16
        %v1887 = vadd.s32 %v1886, %v1884
        %v1888 = vand.u32 %v1820, 65535
        %v1889 = vshra.s32 %v1820, 16
        %v1890 = vcvt.s32.f32 %v1888
        %v1891 = vcvt.s32.f32 %v1889
        %1892 = vmin.xlane.f32.xlu0 %v1891
        %v1893 = vpop.xlane.xlu0 %1892
        %vm1894 = vcmp.eq.f32.partialorder %v1891, %v1893
        %v1895 = vsel %vm1894, %v1890, inf
        %1896 = vmin.xlane.f32.xlu0 %v1895
        %v1897 = vpop.xlane.xlu0 %1896
        %v1898 = vcvt.f32.s32 %v1897
        %v1899 = vcvt.f32.s32 %v1893
        %v1900 = vshll.u32 %v1899, 16
        %v1901 = vadd.s32 %v1900, %v1898
        %v1902 = vand.u32 %v1821, 65535
        %v1903 = vshra.s32 %v1821, 16
        %v1904 = vcvt.s32.f32 %v1902
        %v1905 = vcvt.s32.f32 %v1903
        %1906 = vmin.xlane.f32.xlu0 %v1905
        %v1907 = vpop.xlane.xlu0 %1906
        %vm1908 = vcmp.eq.f32.partialorder %v1905, %v1907
        %v1909 = vsel %vm1908, %v1904, inf
        %1910 = vmin.xlane.f32.xlu0 %v1909
        %v1911 = vpop.xlane.xlu0 %1910
        %v1912 = vcvt.f32.s32 %v1911
        %v1913 = vcvt.f32.s32 %v1907
        %v1914 = vshll.u32 %v1913, 16
        %v1915 = vadd.s32 %v1914, %v1912
        %v1916 = vand.u32 %v1822, 65535
        %v1917 = vshra.s32 %v1822, 16
        %v1918 = vcvt.s32.f32 %v1916
        %v1919 = vcvt.s32.f32 %v1917
        %1920 = vmin.xlane.f32.xlu0 %v1919
        %v1921 = vpop.xlane.xlu0 %1920
        %vm1922 = vcmp.eq.f32.partialorder %v1919, %v1921
        %v1923 = vsel %vm1922, %v1918, inf
        %1924 = vmin.xlane.f32.xlu0 %v1923
        %v1925 = vpop.xlane.xlu0 %1924
        %v1926 = vcvt.f32.s32 %v1925
        %v1927 = vcvt.f32.s32 %v1921
        %v1928 = vshll.u32 %v1927, 16
        %v1929 = vadd.s32 %v1928, %v1926
        %v1930 = vand.u32 %v1823, 65535
        %v1931 = vshra.s32 %v1823, 16
        %v1932 = vcvt.s32.f32 %v1930
        %v1933 = vcvt.s32.f32 %v1931
        %1934 = vmin.xlane.f32.xlu0 %v1933
        %v1935 = vpop.xlane.xlu0 %1934
        %vm1936 = vcmp.eq.f32.partialorder %v1933, %v1935
        %v1937 = vsel %vm1936, %v1932, inf
        %1938 = vmin.xlane.f32.xlu0 %v1937
        %v1939 = vpop.xlane.xlu0 %1938
        %v1940 = vcvt.f32.s32 %v1939
        %v1941 = vcvt.f32.s32 %v1935
        %v1942 = vshll.u32 %v1941, 16
        %v1943 = vadd.s32 %v1942, %v1940
        %v1944 = vand.u32 %v1824, 65535
        %v1945 = vshra.s32 %v1824, 16
        %v1946 = vcvt.s32.f32 %v1944
        %v1947 = vcvt.s32.f32 %v1945
        %1948 = vmin.xlane.f32.xlu0 %v1947
        %v1949 = vpop.xlane.xlu0 %1948
        %vm1950 = vcmp.eq.f32.partialorder %v1947, %v1949
        %v1951 = vsel %vm1950, %v1946, inf
        %1952 = vmin.xlane.f32.xlu0 %v1951
        %v1953 = vpop.xlane.xlu0 %1952
        %v1954 = vcvt.f32.s32 %v1953
        %v1955 = vcvt.f32.s32 %v1949
        %v1956 = vshll.u32 %v1955, 16
        %v1957 = vadd.s32 %v1956, %v1954
        %v1958 = vand.u32 %v1825, 65535
        %v1959 = vshra.s32 %v1825, 16
        %v1960 = vcvt.s32.f32 %v1958
        %v1961 = vcvt.s32.f32 %v1959
        %1962 = vmin.xlane.f32.xlu0 %v1961
        %v1963 = vpop.xlane.xlu0 %1962
        %vm1964 = vcmp.eq.f32.partialorder %v1961, %v1963
        %v1965 = vsel %vm1964, %v1960, inf
        %1966 = vmin.xlane.f32.xlu0 %v1965
        %v1967 = vpop.xlane.xlu0 %1966
        %v1968 = vcvt.f32.s32 %v1967
        %v1969 = vcvt.f32.s32 %v1963
        %v1970 = vshll.u32 %v1969, 16
        %v1971 = vadd.s32 %v1970, %v1968
        %v1972 = vand.u32 %v1826, 65535
        %v1973 = vshra.s32 %v1826, 16
        %v1974 = vcvt.s32.f32 %v1972
        %v1975 = vcvt.s32.f32 %v1973
        %1976 = vmin.xlane.f32.xlu0 %v1975
        %v1977 = vpop.xlane.xlu0 %1976
        %vm1978 = vcmp.eq.f32.partialorder %v1975, %v1977
        %v1979 = vsel %vm1978, %v1974, inf
        %1980 = vmin.xlane.f32.xlu0 %v1979
        %v1981 = vpop.xlane.xlu0 %1980
        %v1982 = vcvt.f32.s32 %v1981
        %v1983 = vcvt.f32.s32 %v1977
        %v1984 = vshll.u32 %v1983, 16
        %v1985 = vadd.s32 %v1984, %v1982
        %v1986 = vand.u32 %v1827, 65535
        %v1987 = vshra.s32 %v1827, 16
        %v1988 = vcvt.s32.f32 %v1986
        %v1989 = vcvt.s32.f32 %v1987
        %1990 = vmin.xlane.f32.xlu0 %v1989
        %v1991 = vpop.xlane.xlu0 %1990
        %vm1992 = vcmp.eq.f32.partialorder %v1989, %v1991
        %v1993 = vsel %vm1992, %v1988, inf
        %1994 = vmin.xlane.f32.xlu0 %v1993
        %v1995 = vpop.xlane.xlu0 %1994
        %v1996 = vcvt.f32.s32 %v1995
        %v1997 = vcvt.f32.s32 %v1991
        %v1998 = vshll.u32 %v1997, 16
        %v1999 = vadd.s32 %v1998, %v1996
        %v2000 = vand.u32 %v1828, 65535
        %v2001 = vshra.s32 %v1828, 16
        %v2002 = vcvt.s32.f32 %v2000
        %v2003 = vcvt.s32.f32 %v2001
        %2004 = vmin.xlane.f32.xlu0 %v2003
        %v2005 = vpop.xlane.xlu0 %2004
        %vm2006 = vcmp.eq.f32.partialorder %v2003, %v2005
        %v2007 = vsel %vm2006, %v2002, inf
        %2008 = vmin.xlane.f32.xlu0 %v2007
        %v2009 = vpop.xlane.xlu0 %2008
        %v2010 = vcvt.f32.s32 %v2009
        %v2011 = vcvt.f32.s32 %v2005
        %v2012 = vshll.u32 %v2011, 16
        %v2013 = vadd.s32 %v2012, %v2010
        %v2014 = vand.u32 %v1829, 65535
        %v2015 = vshra.s32 %v1829, 16
        %v2016 = vcvt.s32.f32 %v2014
        %v2017 = vcvt.s32.f32 %v2015
        %2018 = vmin.xlane.f32.xlu0 %v2017
        %v2019 = vpop.xlane.xlu0 %2018
        %vm2020 = vcmp.eq.f32.partialorder %v2017, %v2019
        %v2021 = vsel %vm2020, %v2016, inf
        %2022 = vmin.xlane.f32.xlu0 %v2021
        %v2023 = vpop.xlane.xlu0 %2022
        %v2024 = vcvt.f32.s32 %v2023
        %v2025 = vcvt.f32.s32 %v2019
        %v2026 = vshll.u32 %v2025, 16
        %v2027 = vadd.s32 %v2026, %v2024
        %v2028 = vand.u32 %v1830, 65535
        %v2029 = vshra.s32 %v1830, 16
        %v2030 = vcvt.s32.f32 %v2028
        %v2031 = vcvt.s32.f32 %v2029
        %2032 = vmin.xlane.f32.xlu0 %v2031
        %v2033 = vpop.xlane.xlu0 %2032
        %vm2034 = vcmp.eq.f32.partialorder %v2031, %v2033
        %v2035 = vsel %vm2034, %v2030, inf
        %2036 = vmin.xlane.f32.xlu0 %v2035
        %v2037 = vpop.xlane.xlu0 %2036
        %v2038 = vcvt.f32.s32 %v2037
        %v2039 = vcvt.f32.s32 %v2033
        %v2040 = vshll.u32 %v2039, 16
        %v2041 = vadd.s32 %v2040, %v2038
        %v2042 = vand.u32 %v1831, 65535
        %v2043 = vshra.s32 %v1831, 16
        %v2044 = vcvt.s32.f32 %v2042
        %v2045 = vcvt.s32.f32 %v2043
        %2046 = vmin.xlane.f32.xlu0 %v2045
        %v2047 = vpop.xlane.xlu0 %2046
        %vm2048 = vcmp.eq.f32.partialorder %v2045, %v2047
        %v2049 = vsel %vm2048, %v2044, inf
        %2050 = vmin.xlane.f32.xlu0 %v2049
        %v2051 = vpop.xlane.xlu0 %2050
        %v2052 = vcvt.f32.s32 %v2051
        %v2053 = vcvt.f32.s32 %v2047
        %v2054 = vshll.u32 %v2053, 16
        %v2055 = vadd.s32 %v2054, %v2052
        %vm2056 = vcmp.eq.s32.totalorder %v1380, %v1845
        %vm2057 = vcmp.eq.s32.totalorder %v1380, %v1859
        %vm2058 = vcmp.eq.s32.totalorder %v1380, %v1873
        %vm2059 = vcmp.eq.s32.totalorder %v1380, %v1887
        %vm2060 = vcmp.eq.s32.totalorder %v1380, %v1901
        %vm2061 = vcmp.eq.s32.totalorder %v1380, %v1915
        %vm2062 = vcmp.eq.s32.totalorder %v1380, %v1929
        %vm2063 = vcmp.eq.s32.totalorder %v1380, %v1943
        %vm2064 = vcmp.eq.s32.totalorder %v1380, %v1957
        %vm2065 = vcmp.eq.s32.totalorder %v1380, %v1971
        %vm2066 = vcmp.eq.s32.totalorder %v1380, %v1985
        %vm2067 = vcmp.eq.s32.totalorder %v1380, %v1999
        %vm2068 = vcmp.eq.s32.totalorder %v1380, %v2013
        %vm2069 = vcmp.eq.s32.totalorder %v1380, %v2027
        %vm2070 = vcmp.eq.s32.totalorder %v1380, %v2041
        %vm2071 = vcmp.eq.s32.totalorder %v1380, %v2055
        %vm2072 = vmor %vm1736, %vm2056
        %vm2073 = vmor %vm1737, %vm2057
        %vm2074 = vmor %vm1738, %vm2058
        %vm2075 = vmor %vm1739, %vm2059
        %vm2076 = vmor %vm1740, %vm2060
        %vm2077 = vmor %vm1741, %vm2061
        %vm2078 = vmor %vm1742, %vm2062
        %vm2079 = vmor %vm1743, %vm2063
        %vm2080 = vmor %vm1744, %vm2064
        %vm2081 = vmor %vm1745, %vm2065
        %vm2082 = vmor %vm1746, %vm2066
        %vm2083 = vmor %vm1747, %vm2067
        %vm2084 = vmor %vm1748, %vm2068
        %vm2085 = vmor %vm1749, %vm2069
        %vm2086 = vmor %vm1750, %vm2070
        %vm2087 = vmor %vm1751, %vm2071
        %v2088 = vsel %vm2056, 1e+30, %v1752
        %v2089 = vsel %vm2057, 1e+30, %v1753
        %v2090 = vsel %vm2058, 1e+30, %v1754
        %v2091 = vsel %vm2059, 1e+30, %v1755
        %v2092 = vsel %vm2060, 1e+30, %v1756
        %v2093 = vsel %vm2061, 1e+30, %v1757
        %v2094 = vsel %vm2062, 1e+30, %v1758
        %v2095 = vsel %vm2063, 1e+30, %v1759
        %v2096 = vsel %vm2064, 1e+30, %v1760
        %v2097 = vsel %vm2065, 1e+30, %v1761
        %v2098 = vsel %vm2066, 1e+30, %v1762
        %v2099 = vsel %vm2067, 1e+30, %v1763
        %v2100 = vsel %vm2068, 1e+30, %v1764
        %v2101 = vsel %vm2069, 1e+30, %v1765
        %v2102 = vsel %vm2070, 1e+30, %v1766
        %v2103 = vsel %vm2071, 1e+30, %v1767
        %2104 = vmin.xlane.f32.xlu0 %v2088
        %v2105 = vpop.xlane.xlu0 %2104
        %2106 = vmin.xlane.f32.xlu0 %v2089
        %v2107 = vpop.xlane.xlu0 %2106
        %2108 = vmin.xlane.f32.xlu0 %v2090
        %v2109 = vpop.xlane.xlu0 %2108
        %2110 = vmin.xlane.f32.xlu0 %v2091
        %v2111 = vpop.xlane.xlu0 %2110
        %2112 = vmin.xlane.f32.xlu0 %v2092
        %v2113 = vpop.xlane.xlu0 %2112
        %2114 = vmin.xlane.f32.xlu0 %v2093
        %v2115 = vpop.xlane.xlu0 %2114
        %2116 = vmin.xlane.f32.xlu0 %v2094
        %v2117 = vpop.xlane.xlu0 %2116
        %2118 = vmin.xlane.f32.xlu0 %v2095
        %v2119 = vpop.xlane.xlu0 %2118
        %2120 = vmin.xlane.f32.xlu0 %v2096
        %v2121 = vpop.xlane.xlu0 %2120
        %2122 = vmin.xlane.f32.xlu0 %v2097
        %v2123 = vpop.xlane.xlu0 %2122
        %2124 = vmin.xlane.f32.xlu0 %v2098
        %v2125 = vpop.xlane.xlu0 %2124
        %2126 = vmin.xlane.f32.xlu0 %v2099
        %v2127 = vpop.xlane.xlu0 %2126
        %2128 = vmin.xlane.f32.xlu0 %v2100
        %v2129 = vpop.xlane.xlu0 %2128
        %2130 = vmin.xlane.f32.xlu0 %v2101
        %v2131 = vpop.xlane.xlu0 %2130
        %2132 = vmin.xlane.f32.xlu0 %v2102
        %v2133 = vpop.xlane.xlu0 %2132
        %2134 = vmin.xlane.f32.xlu0 %v2103
        %v2135 = vpop.xlane.xlu0 %2134
        %vm2136 = vcmp.eq.f32.partialorder %v2088, %v2105
        %vm2137 = vcmp.eq.f32.partialorder %v2089, %v2107
        %vm2138 = vcmp.eq.f32.partialorder %v2090, %v2109
        %vm2139 = vcmp.eq.f32.partialorder %v2091, %v2111
        %vm2140 = vcmp.eq.f32.partialorder %v2092, %v2113
        %vm2141 = vcmp.eq.f32.partialorder %v2093, %v2115
        %vm2142 = vcmp.eq.f32.partialorder %v2094, %v2117
        %vm2143 = vcmp.eq.f32.partialorder %v2095, %v2119
        %vm2144 = vcmp.eq.f32.partialorder %v2096, %v2121
        %vm2145 = vcmp.eq.f32.partialorder %v2097, %v2123
        %vm2146 = vcmp.eq.f32.partialorder %v2098, %v2125
        %vm2147 = vcmp.eq.f32.partialorder %v2099, %v2127
        %vm2148 = vcmp.eq.f32.partialorder %v2100, %v2129
        %vm2149 = vcmp.eq.f32.partialorder %v2101, %v2131
        %vm2150 = vcmp.eq.f32.partialorder %v2102, %v2133
        %vm2151 = vcmp.eq.f32.partialorder %v2103, %v2135
        %v2152 = vsel %vm2136, %v1380, 128
        %v2153 = vsel %vm2137, %v1380, 128
        %v2154 = vsel %vm2138, %v1380, 128
        %v2155 = vsel %vm2139, %v1380, 128
        %v2156 = vsel %vm2140, %v1380, 128
        %v2157 = vsel %vm2141, %v1380, 128
        %v2158 = vsel %vm2142, %v1380, 128
        %v2159 = vsel %vm2143, %v1380, 128
        %v2160 = vsel %vm2144, %v1380, 128
        %v2161 = vsel %vm2145, %v1380, 128
        %v2162 = vsel %vm2146, %v1380, 128
        %v2163 = vsel %vm2147, %v1380, 128
        %v2164 = vsel %vm2148, %v1380, 128
        %v2165 = vsel %vm2149, %v1380, 128
        %v2166 = vsel %vm2150, %v1380, 128
        %v2167 = vsel %vm2151, %v1380, 128
        %v2168 = vand.u32 %v2152, 65535
        %v2169 = vshra.s32 %v2152, 16
        %v2170 = vcvt.s32.f32 %v2168
        %v2171 = vcvt.s32.f32 %v2169
        %2172 = vmin.xlane.f32.xlu0 %v2171
        %v2173 = vpop.xlane.xlu0 %2172
        %vm2174 = vcmp.eq.f32.partialorder %v2171, %v2173
        %v2175 = vsel %vm2174, %v2170, inf
        %2176 = vmin.xlane.f32.xlu0 %v2175
        %v2177 = vpop.xlane.xlu0 %2176
        %v2178 = vcvt.f32.s32 %v2177
        %v2179 = vcvt.f32.s32 %v2173
        %v2180 = vshll.u32 %v2179, 16
        %v2181 = vadd.s32 %v2180, %v2178
        %v2182 = vand.u32 %v2153, 65535
        %v2183 = vshra.s32 %v2153, 16
        %v2184 = vcvt.s32.f32 %v2182
        %v2185 = vcvt.s32.f32 %v2183
        %2186 = vmin.xlane.f32.xlu0 %v2185
        %v2187 = vpop.xlane.xlu0 %2186
        %vm2188 = vcmp.eq.f32.partialorder %v2185, %v2187
        %v2189 = vsel %vm2188, %v2184, inf
        %2190 = vmin.xlane.f32.xlu0 %v2189
        %v2191 = vpop.xlane.xlu0 %2190
        %v2192 = vcvt.f32.s32 %v2191
        %v2193 = vcvt.f32.s32 %v2187
        %v2194 = vshll.u32 %v2193, 16
        %v2195 = vadd.s32 %v2194, %v2192
        %v2196 = vand.u32 %v2154, 65535
        %v2197 = vshra.s32 %v2154, 16
        %v2198 = vcvt.s32.f32 %v2196
        %v2199 = vcvt.s32.f32 %v2197
        %2200 = vmin.xlane.f32.xlu0 %v2199
        %v2201 = vpop.xlane.xlu0 %2200
        %vm2202 = vcmp.eq.f32.partialorder %v2199, %v2201
        %v2203 = vsel %vm2202, %v2198, inf
        %2204 = vmin.xlane.f32.xlu0 %v2203
        %v2205 = vpop.xlane.xlu0 %2204
        %v2206 = vcvt.f32.s32 %v2205
        %v2207 = vcvt.f32.s32 %v2201
        %v2208 = vshll.u32 %v2207, 16
        %v2209 = vadd.s32 %v2208, %v2206
        %v2210 = vand.u32 %v2155, 65535
        %v2211 = vshra.s32 %v2155, 16
        %v2212 = vcvt.s32.f32 %v2210
        %v2213 = vcvt.s32.f32 %v2211
        %2214 = vmin.xlane.f32.xlu0 %v2213
        %v2215 = vpop.xlane.xlu0 %2214
        %vm2216 = vcmp.eq.f32.partialorder %v2213, %v2215
        %v2217 = vsel %vm2216, %v2212, inf
        %2218 = vmin.xlane.f32.xlu0 %v2217
        %v2219 = vpop.xlane.xlu0 %2218
        %v2220 = vcvt.f32.s32 %v2219
        %v2221 = vcvt.f32.s32 %v2215
        %v2222 = vshll.u32 %v2221, 16
        %v2223 = vadd.s32 %v2222, %v2220
        %v2224 = vand.u32 %v2156, 65535
        %v2225 = vshra.s32 %v2156, 16
        %v2226 = vcvt.s32.f32 %v2224
        %v2227 = vcvt.s32.f32 %v2225
        %2228 = vmin.xlane.f32.xlu0 %v2227
        %v2229 = vpop.xlane.xlu0 %2228
        %vm2230 = vcmp.eq.f32.partialorder %v2227, %v2229
        %v2231 = vsel %vm2230, %v2226, inf
        %2232 = vmin.xlane.f32.xlu0 %v2231
        %v2233 = vpop.xlane.xlu0 %2232
        %v2234 = vcvt.f32.s32 %v2233
        %v2235 = vcvt.f32.s32 %v2229
        %v2236 = vshll.u32 %v2235, 16
        %v2237 = vadd.s32 %v2236, %v2234
        %v2238 = vand.u32 %v2157, 65535
        %v2239 = vshra.s32 %v2157, 16
        %v2240 = vcvt.s32.f32 %v2238
        %v2241 = vcvt.s32.f32 %v2239
        %2242 = vmin.xlane.f32.xlu0 %v2241
        %v2243 = vpop.xlane.xlu0 %2242
        %vm2244 = vcmp.eq.f32.partialorder %v2241, %v2243
        %v2245 = vsel %vm2244, %v2240, inf
        %2246 = vmin.xlane.f32.xlu0 %v2245
        %v2247 = vpop.xlane.xlu0 %2246
        %v2248 = vcvt.f32.s32 %v2247
        %v2249 = vcvt.f32.s32 %v2243
        %v2250 = vshll.u32 %v2249, 16
        %v2251 = vadd.s32 %v2250, %v2248
        %v2252 = vand.u32 %v2158, 65535
        %v2253 = vshra.s32 %v2158, 16
        %v2254 = vcvt.s32.f32 %v2252
        %v2255 = vcvt.s32.f32 %v2253
        %2256 = vmin.xlane.f32.xlu0 %v2255
        %v2257 = vpop.xlane.xlu0 %2256
        %vm2258 = vcmp.eq.f32.partialorder %v2255, %v2257
        %v2259 = vsel %vm2258, %v2254, inf
        %2260 = vmin.xlane.f32.xlu0 %v2259
        %v2261 = vpop.xlane.xlu0 %2260
        %v2262 = vcvt.f32.s32 %v2261
        %v2263 = vcvt.f32.s32 %v2257
        %v2264 = vshll.u32 %v2263, 16
        %v2265 = vadd.s32 %v2264, %v2262
        %v2266 = vand.u32 %v2159, 65535
        %v2267 = vshra.s32 %v2159, 16
        %v2268 = vcvt.s32.f32 %v2266
        %v2269 = vcvt.s32.f32 %v2267
        %2270 = vmin.xlane.f32.xlu0 %v2269
        %v2271 = vpop.xlane.xlu0 %2270
        %vm2272 = vcmp.eq.f32.partialorder %v2269, %v2271
        %v2273 = vsel %vm2272, %v2268, inf
        %2274 = vmin.xlane.f32.xlu0 %v2273
        %v2275 = vpop.xlane.xlu0 %2274
        %v2276 = vcvt.f32.s32 %v2275
        %v2277 = vcvt.f32.s32 %v2271
        %v2278 = vshll.u32 %v2277, 16
        %v2279 = vadd.s32 %v2278, %v2276
        %v2280 = vand.u32 %v2160, 65535
        %v2281 = vshra.s32 %v2160, 16
        %v2282 = vcvt.s32.f32 %v2280
        %v2283 = vcvt.s32.f32 %v2281
        %2284 = vmin.xlane.f32.xlu0 %v2283
        %v2285 = vpop.xlane.xlu0 %2284
        %vm2286 = vcmp.eq.f32.partialorder %v2283, %v2285
        %v2287 = vsel %vm2286, %v2282, inf
        %2288 = vmin.xlane.f32.xlu0 %v2287
        %v2289 = vpop.xlane.xlu0 %2288
        %v2290 = vcvt.f32.s32 %v2289
        %v2291 = vcvt.f32.s32 %v2285
        %v2292 = vshll.u32 %v2291, 16
        %v2293 = vadd.s32 %v2292, %v2290
        %v2294 = vand.u32 %v2161, 65535
        %v2295 = vshra.s32 %v2161, 16
        %v2296 = vcvt.s32.f32 %v2294
        %v2297 = vcvt.s32.f32 %v2295
        %2298 = vmin.xlane.f32.xlu0 %v2297
        %v2299 = vpop.xlane.xlu0 %2298
        %vm2300 = vcmp.eq.f32.partialorder %v2297, %v2299
        %v2301 = vsel %vm2300, %v2296, inf
        %2302 = vmin.xlane.f32.xlu0 %v2301
        %v2303 = vpop.xlane.xlu0 %2302
        %v2304 = vcvt.f32.s32 %v2303
        %v2305 = vcvt.f32.s32 %v2299
        %v2306 = vshll.u32 %v2305, 16
        %v2307 = vadd.s32 %v2306, %v2304
        %v2308 = vand.u32 %v2162, 65535
        %v2309 = vshra.s32 %v2162, 16
        %v2310 = vcvt.s32.f32 %v2308
        %v2311 = vcvt.s32.f32 %v2309
        %2312 = vmin.xlane.f32.xlu0 %v2311
        %v2313 = vpop.xlane.xlu0 %2312
        %vm2314 = vcmp.eq.f32.partialorder %v2311, %v2313
        %v2315 = vsel %vm2314, %v2310, inf
        %2316 = vmin.xlane.f32.xlu0 %v2315
        %v2317 = vpop.xlane.xlu0 %2316
        %v2318 = vcvt.f32.s32 %v2317
        %v2319 = vcvt.f32.s32 %v2313
        %v2320 = vshll.u32 %v2319, 16
        %v2321 = vadd.s32 %v2320, %v2318
        %v2322 = vand.u32 %v2163, 65535
        %v2323 = vshra.s32 %v2163, 16
        %v2324 = vcvt.s32.f32 %v2322
        %v2325 = vcvt.s32.f32 %v2323
        %2326 = vmin.xlane.f32.xlu0 %v2325
        %v2327 = vpop.xlane.xlu0 %2326
        %vm2328 = vcmp.eq.f32.partialorder %v2325, %v2327
        %v2329 = vsel %vm2328, %v2324, inf
        %2330 = vmin.xlane.f32.xlu0 %v2329
        %v2331 = vpop.xlane.xlu0 %2330
        %v2332 = vcvt.f32.s32 %v2331
        %v2333 = vcvt.f32.s32 %v2327
        %v2334 = vshll.u32 %v2333, 16
        %v2335 = vadd.s32 %v2334, %v2332
        %v2336 = vand.u32 %v2164, 65535
        %v2337 = vshra.s32 %v2164, 16
        %v2338 = vcvt.s32.f32 %v2336
        %v2339 = vcvt.s32.f32 %v2337
        %2340 = vmin.xlane.f32.xlu0 %v2339
        %v2341 = vpop.xlane.xlu0 %2340
        %vm2342 = vcmp.eq.f32.partialorder %v2339, %v2341
        %v2343 = vsel %vm2342, %v2338, inf
        %2344 = vmin.xlane.f32.xlu0 %v2343
        %v2345 = vpop.xlane.xlu0 %2344
        %v2346 = vcvt.f32.s32 %v2345
        %v2347 = vcvt.f32.s32 %v2341
        %v2348 = vshll.u32 %v2347, 16
        %v2349 = vadd.s32 %v2348, %v2346
        %v2350 = vand.u32 %v2165, 65535
        %v2351 = vshra.s32 %v2165, 16
        %v2352 = vcvt.s32.f32 %v2350
        %v2353 = vcvt.s32.f32 %v2351
        %2354 = vmin.xlane.f32.xlu0 %v2353
        %v2355 = vpop.xlane.xlu0 %2354
        %vm2356 = vcmp.eq.f32.partialorder %v2353, %v2355
        %v2357 = vsel %vm2356, %v2352, inf
        %2358 = vmin.xlane.f32.xlu0 %v2357
        %v2359 = vpop.xlane.xlu0 %2358
        %v2360 = vcvt.f32.s32 %v2359
        %v2361 = vcvt.f32.s32 %v2355
        %v2362 = vshll.u32 %v2361, 16
        %v2363 = vadd.s32 %v2362, %v2360
        %v2364 = vand.u32 %v2166, 65535
        %v2365 = vshra.s32 %v2166, 16
        %v2366 = vcvt.s32.f32 %v2364
        %v2367 = vcvt.s32.f32 %v2365
        %2368 = vmin.xlane.f32.xlu0 %v2367
        %v2369 = vpop.xlane.xlu0 %2368
        %vm2370 = vcmp.eq.f32.partialorder %v2367, %v2369
        %v2371 = vsel %vm2370, %v2366, inf
        %2372 = vmin.xlane.f32.xlu0 %v2371
        %v2373 = vpop.xlane.xlu0 %2372
        %v2374 = vcvt.f32.s32 %v2373
        %v2375 = vcvt.f32.s32 %v2369
        %v2376 = vshll.u32 %v2375, 16
        %v2377 = vadd.s32 %v2376, %v2374
        %v2378 = vand.u32 %v2167, 65535
        %v2379 = vshra.s32 %v2167, 16
        %v2380 = vcvt.s32.f32 %v2378
        %v2381 = vcvt.s32.f32 %v2379
        %2382 = vmin.xlane.f32.xlu0 %v2381
        %v2383 = vpop.xlane.xlu0 %2382
        %vm2384 = vcmp.eq.f32.partialorder %v2381, %v2383
        %v2385 = vsel %vm2384, %v2380, inf
        %2386 = vmin.xlane.f32.xlu0 %v2385
        %v2387 = vpop.xlane.xlu0 %2386
        %v2388 = vcvt.f32.s32 %v2387
        %v2389 = vcvt.f32.s32 %v2383
        %v2390 = vshll.u32 %v2389, 16
        %v2391 = vadd.s32 %v2390, %v2388
        %vm2392 = vcmp.eq.s32.totalorder %v1380, %v2181
        %vm2393 = vcmp.eq.s32.totalorder %v1380, %v2195
        %vm2394 = vcmp.eq.s32.totalorder %v1380, %v2209
        %vm2395 = vcmp.eq.s32.totalorder %v1380, %v2223
        %vm2396 = vcmp.eq.s32.totalorder %v1380, %v2237
        %vm2397 = vcmp.eq.s32.totalorder %v1380, %v2251
        %vm2398 = vcmp.eq.s32.totalorder %v1380, %v2265
        %vm2399 = vcmp.eq.s32.totalorder %v1380, %v2279
        %vm2400 = vcmp.eq.s32.totalorder %v1380, %v2293
        %vm2401 = vcmp.eq.s32.totalorder %v1380, %v2307
        %vm2402 = vcmp.eq.s32.totalorder %v1380, %v2321
        %vm2403 = vcmp.eq.s32.totalorder %v1380, %v2335
        %vm2404 = vcmp.eq.s32.totalorder %v1380, %v2349
        %vm2405 = vcmp.eq.s32.totalorder %v1380, %v2363
        %vm2406 = vcmp.eq.s32.totalorder %v1380, %v2377
        %vm2407 = vcmp.eq.s32.totalorder %v1380, %v2391
        %vm2408 = vmor %vm2072, %vm2392
        %vm2409 = vmor %vm2073, %vm2393
        %vm2410 = vmor %vm2074, %vm2394
        %vm2411 = vmor %vm2075, %vm2395
        %vm2412 = vmor %vm2076, %vm2396
        %vm2413 = vmor %vm2077, %vm2397
        %vm2414 = vmor %vm2078, %vm2398
        %vm2415 = vmor %vm2079, %vm2399
        %vm2416 = vmor %vm2080, %vm2400
        %vm2417 = vmor %vm2081, %vm2401
        %vm2418 = vmor %vm2082, %vm2402
        %vm2419 = vmor %vm2083, %vm2403
        %vm2420 = vmor %vm2084, %vm2404
        %vm2421 = vmor %vm2085, %vm2405
        %vm2422 = vmor %vm2086, %vm2406
        %vm2423 = vmor %vm2087, %vm2407
        %v2424 = vsel %vm2392, 1e+30, %v2088
        %v2425 = vsel %vm2393, 1e+30, %v2089
        %v2426 = vsel %vm2394, 1e+30, %v2090
        %v2427 = vsel %vm2395, 1e+30, %v2091
        %v2428 = vsel %vm2396, 1e+30, %v2092
        %v2429 = vsel %vm2397, 1e+30, %v2093
        %v2430 = vsel %vm2398, 1e+30, %v2094
        %v2431 = vsel %vm2399, 1e+30, %v2095
        %v2432 = vsel %vm2400, 1e+30, %v2096
        %v2433 = vsel %vm2401, 1e+30, %v2097
        %v2434 = vsel %vm2402, 1e+30, %v2098
        %v2435 = vsel %vm2403, 1e+30, %v2099
        %v2436 = vsel %vm2404, 1e+30, %v2100
        %v2437 = vsel %vm2405, 1e+30, %v2101
        %v2438 = vsel %vm2406, 1e+30, %v2102
        %v2439 = vsel %vm2407, 1e+30, %v2103
        %2440 = vmin.xlane.f32.xlu0 %v2424
        %v2441 = vpop.xlane.xlu0 %2440
        %2442 = vmin.xlane.f32.xlu0 %v2425
        %v2443 = vpop.xlane.xlu0 %2442
        %2444 = vmin.xlane.f32.xlu0 %v2426
        %v2445 = vpop.xlane.xlu0 %2444
        %2446 = vmin.xlane.f32.xlu0 %v2427
        %v2447 = vpop.xlane.xlu0 %2446
        %2448 = vmin.xlane.f32.xlu0 %v2428
        %v2449 = vpop.xlane.xlu0 %2448
        %2450 = vmin.xlane.f32.xlu0 %v2429
        %v2451 = vpop.xlane.xlu0 %2450
        %2452 = vmin.xlane.f32.xlu0 %v2430
        %v2453 = vpop.xlane.xlu0 %2452
        %2454 = vmin.xlane.f32.xlu0 %v2431
        %v2455 = vpop.xlane.xlu0 %2454
        %2456 = vmin.xlane.f32.xlu0 %v2432
        %v2457 = vpop.xlane.xlu0 %2456
        %2458 = vmin.xlane.f32.xlu0 %v2433
        %v2459 = vpop.xlane.xlu0 %2458
        %2460 = vmin.xlane.f32.xlu0 %v2434
        %v2461 = vpop.xlane.xlu0 %2460
        %2462 = vmin.xlane.f32.xlu0 %v2435
        %v2463 = vpop.xlane.xlu0 %2462
        %2464 = vmin.xlane.f32.xlu0 %v2436
        %v2465 = vpop.xlane.xlu0 %2464
        %2466 = vmin.xlane.f32.xlu0 %v2437
        %v2467 = vpop.xlane.xlu0 %2466
        %2468 = vmin.xlane.f32.xlu0 %v2438
        %v2469 = vpop.xlane.xlu0 %2468
        %2470 = vmin.xlane.f32.xlu0 %v2439
        %v2471 = vpop.xlane.xlu0 %2470
        %vm2472 = vcmp.eq.f32.partialorder %v2424, %v2441
        %vm2473 = vcmp.eq.f32.partialorder %v2425, %v2443
        %vm2474 = vcmp.eq.f32.partialorder %v2426, %v2445
        %vm2475 = vcmp.eq.f32.partialorder %v2427, %v2447
        %vm2476 = vcmp.eq.f32.partialorder %v2428, %v2449
        %vm2477 = vcmp.eq.f32.partialorder %v2429, %v2451
        %vm2478 = vcmp.eq.f32.partialorder %v2430, %v2453
        %vm2479 = vcmp.eq.f32.partialorder %v2431, %v2455
        %vm2480 = vcmp.eq.f32.partialorder %v2432, %v2457
        %vm2481 = vcmp.eq.f32.partialorder %v2433, %v2459
        %vm2482 = vcmp.eq.f32.partialorder %v2434, %v2461
        %vm2483 = vcmp.eq.f32.partialorder %v2435, %v2463
        %vm2484 = vcmp.eq.f32.partialorder %v2436, %v2465
        %vm2485 = vcmp.eq.f32.partialorder %v2437, %v2467
        %vm2486 = vcmp.eq.f32.partialorder %v2438, %v2469
        %vm2487 = vcmp.eq.f32.partialorder %v2439, %v2471
        %v2488 = vsel %vm2472, %v1380, 128
        %v2489 = vsel %vm2473, %v1380, 128
        %v2490 = vsel %vm2474, %v1380, 128
        %v2491 = vsel %vm2475, %v1380, 128
        %v2492 = vsel %vm2476, %v1380, 128
        %v2493 = vsel %vm2477, %v1380, 128
        %v2494 = vsel %vm2478, %v1380, 128
        %v2495 = vsel %vm2479, %v1380, 128
        %v2496 = vsel %vm2480, %v1380, 128
        %v2497 = vsel %vm2481, %v1380, 128
        %v2498 = vsel %vm2482, %v1380, 128
        %v2499 = vsel %vm2483, %v1380, 128
        %v2500 = vsel %vm2484, %v1380, 128
        %v2501 = vsel %vm2485, %v1380, 128
        %v2502 = vsel %vm2486, %v1380, 128
        %v2503 = vsel %vm2487, %v1380, 128
        %v2504 = vand.u32 %v2488, 65535
        %v2505 = vshra.s32 %v2488, 16
        %v2506 = vcvt.s32.f32 %v2504
        %v2507 = vcvt.s32.f32 %v2505
        %2508 = vmin.xlane.f32.xlu0 %v2507
        %v2509 = vpop.xlane.xlu0 %2508
        %vm2510 = vcmp.eq.f32.partialorder %v2507, %v2509
        %v2511 = vsel %vm2510, %v2506, inf
        %2512 = vmin.xlane.f32.xlu0 %v2511
        %v2513 = vpop.xlane.xlu0 %2512
        %v2514 = vcvt.f32.s32 %v2513
        %v2515 = vcvt.f32.s32 %v2509
        %v2516 = vshll.u32 %v2515, 16
        %v2517 = vadd.s32 %v2516, %v2514
        %v2518 = vand.u32 %v2489, 65535
        %v2519 = vshra.s32 %v2489, 16
        %v2520 = vcvt.s32.f32 %v2518
        %v2521 = vcvt.s32.f32 %v2519
        %2522 = vmin.xlane.f32.xlu0 %v2521
        %v2523 = vpop.xlane.xlu0 %2522
        %vm2524 = vcmp.eq.f32.partialorder %v2521, %v2523
        %v2525 = vsel %vm2524, %v2520, inf
        %2526 = vmin.xlane.f32.xlu0 %v2525
        %v2527 = vpop.xlane.xlu0 %2526
        %v2528 = vcvt.f32.s32 %v2527
        %v2529 = vcvt.f32.s32 %v2523
        %v2530 = vshll.u32 %v2529, 16
        %v2531 = vadd.s32 %v2530, %v2528
        %v2532 = vand.u32 %v2490, 65535
        %v2533 = vshra.s32 %v2490, 16
        %v2534 = vcvt.s32.f32 %v2532
        %v2535 = vcvt.s32.f32 %v2533
        %2536 = vmin.xlane.f32.xlu0 %v2535
        %v2537 = vpop.xlane.xlu0 %2536
        %vm2538 = vcmp.eq.f32.partialorder %v2535, %v2537
        %v2539 = vsel %vm2538, %v2534, inf
        %2540 = vmin.xlane.f32.xlu0 %v2539
        %v2541 = vpop.xlane.xlu0 %2540
        %v2542 = vcvt.f32.s32 %v2541
        %v2543 = vcvt.f32.s32 %v2537
        %v2544 = vshll.u32 %v2543, 16
        %v2545 = vadd.s32 %v2544, %v2542
        %v2546 = vand.u32 %v2491, 65535
        %v2547 = vshra.s32 %v2491, 16
        %v2548 = vcvt.s32.f32 %v2546
        %v2549 = vcvt.s32.f32 %v2547
        %2550 = vmin.xlane.f32.xlu0 %v2549
        %v2551 = vpop.xlane.xlu0 %2550
        %vm2552 = vcmp.eq.f32.partialorder %v2549, %v2551
        %v2553 = vsel %vm2552, %v2548, inf
        %2554 = vmin.xlane.f32.xlu0 %v2553
        %v2555 = vpop.xlane.xlu0 %2554
        %v2556 = vcvt.f32.s32 %v2555
        %v2557 = vcvt.f32.s32 %v2551
        %v2558 = vshll.u32 %v2557, 16
        %v2559 = vadd.s32 %v2558, %v2556
        %v2560 = vand.u32 %v2492, 65535
        %v2561 = vshra.s32 %v2492, 16
        %v2562 = vcvt.s32.f32 %v2560
        %v2563 = vcvt.s32.f32 %v2561
        %2564 = vmin.xlane.f32.xlu0 %v2563
        %v2565 = vpop.xlane.xlu0 %2564
        %vm2566 = vcmp.eq.f32.partialorder %v2563, %v2565
        %v2567 = vsel %vm2566, %v2562, inf
        %2568 = vmin.xlane.f32.xlu0 %v2567
        %v2569 = vpop.xlane.xlu0 %2568
        %v2570 = vcvt.f32.s32 %v2569
        %v2571 = vcvt.f32.s32 %v2565
        %v2572 = vshll.u32 %v2571, 16
        %v2573 = vadd.s32 %v2572, %v2570
        %v2574 = vand.u32 %v2493, 65535
        %v2575 = vshra.s32 %v2493, 16
        %v2576 = vcvt.s32.f32 %v2574
        %v2577 = vcvt.s32.f32 %v2575
        %2578 = vmin.xlane.f32.xlu0 %v2577
        %v2579 = vpop.xlane.xlu0 %2578
        %vm2580 = vcmp.eq.f32.partialorder %v2577, %v2579
        %v2581 = vsel %vm2580, %v2576, inf
        %2582 = vmin.xlane.f32.xlu0 %v2581
        %v2583 = vpop.xlane.xlu0 %2582
        %v2584 = vcvt.f32.s32 %v2583
        %v2585 = vcvt.f32.s32 %v2579
        %v2586 = vshll.u32 %v2585, 16
        %v2587 = vadd.s32 %v2586, %v2584
        %v2588 = vand.u32 %v2494, 65535
        %v2589 = vshra.s32 %v2494, 16
        %v2590 = vcvt.s32.f32 %v2588
        %v2591 = vcvt.s32.f32 %v2589
        %2592 = vmin.xlane.f32.xlu0 %v2591
        %v2593 = vpop.xlane.xlu0 %2592
        %vm2594 = vcmp.eq.f32.partialorder %v2591, %v2593
        %v2595 = vsel %vm2594, %v2590, inf
        %2596 = vmin.xlane.f32.xlu0 %v2595
        %v2597 = vpop.xlane.xlu0 %2596
        %v2598 = vcvt.f32.s32 %v2597
        %v2599 = vcvt.f32.s32 %v2593
        %v2600 = vshll.u32 %v2599, 16
        %v2601 = vadd.s32 %v2600, %v2598
        %v2602 = vand.u32 %v2495, 65535
        %v2603 = vshra.s32 %v2495, 16
        %v2604 = vcvt.s32.f32 %v2602
        %v2605 = vcvt.s32.f32 %v2603
        %2606 = vmin.xlane.f32.xlu0 %v2605
        %v2607 = vpop.xlane.xlu0 %2606
        %vm2608 = vcmp.eq.f32.partialorder %v2605, %v2607
        %v2609 = vsel %vm2608, %v2604, inf
        %2610 = vmin.xlane.f32.xlu0 %v2609
        %v2611 = vpop.xlane.xlu0 %2610
        %v2612 = vcvt.f32.s32 %v2611
        %v2613 = vcvt.f32.s32 %v2607
        %v2614 = vshll.u32 %v2613, 16
        %v2615 = vadd.s32 %v2614, %v2612
        %v2616 = vand.u32 %v2496, 65535
        %v2617 = vshra.s32 %v2496, 16
        %v2618 = vcvt.s32.f32 %v2616
        %v2619 = vcvt.s32.f32 %v2617
        %2620 = vmin.xlane.f32.xlu0 %v2619
        %v2621 = vpop.xlane.xlu0 %2620
        %vm2622 = vcmp.eq.f32.partialorder %v2619, %v2621
        %v2623 = vsel %vm2622, %v2618, inf
        %2624 = vmin.xlane.f32.xlu0 %v2623
        %v2625 = vpop.xlane.xlu0 %2624
        %v2626 = vcvt.f32.s32 %v2625
        %v2627 = vcvt.f32.s32 %v2621
        %v2628 = vshll.u32 %v2627, 16
        %v2629 = vadd.s32 %v2628, %v2626
        %v2630 = vand.u32 %v2497, 65535
        %v2631 = vshra.s32 %v2497, 16
        %v2632 = vcvt.s32.f32 %v2630
        %v2633 = vcvt.s32.f32 %v2631
        %2634 = vmin.xlane.f32.xlu0 %v2633
        %v2635 = vpop.xlane.xlu0 %2634
        %vm2636 = vcmp.eq.f32.partialorder %v2633, %v2635
        %v2637 = vsel %vm2636, %v2632, inf
        %2638 = vmin.xlane.f32.xlu0 %v2637
        %v2639 = vpop.xlane.xlu0 %2638
        %v2640 = vcvt.f32.s32 %v2639
        %v2641 = vcvt.f32.s32 %v2635
        %v2642 = vshll.u32 %v2641, 16
        %v2643 = vadd.s32 %v2642, %v2640
        %v2644 = vand.u32 %v2498, 65535
        %v2645 = vshra.s32 %v2498, 16
        %v2646 = vcvt.s32.f32 %v2644
        %v2647 = vcvt.s32.f32 %v2645
        %2648 = vmin.xlane.f32.xlu0 %v2647
        %v2649 = vpop.xlane.xlu0 %2648
        %vm2650 = vcmp.eq.f32.partialorder %v2647, %v2649
        %v2651 = vsel %vm2650, %v2646, inf
        %2652 = vmin.xlane.f32.xlu0 %v2651
        %v2653 = vpop.xlane.xlu0 %2652
        %v2654 = vcvt.f32.s32 %v2653
        %v2655 = vcvt.f32.s32 %v2649
        %v2656 = vshll.u32 %v2655, 16
        %v2657 = vadd.s32 %v2656, %v2654
        %v2658 = vand.u32 %v2499, 65535
        %v2659 = vshra.s32 %v2499, 16
        %v2660 = vcvt.s32.f32 %v2658
        %v2661 = vcvt.s32.f32 %v2659
        %2662 = vmin.xlane.f32.xlu0 %v2661
        %v2663 = vpop.xlane.xlu0 %2662
        %vm2664 = vcmp.eq.f32.partialorder %v2661, %v2663
        %v2665 = vsel %vm2664, %v2660, inf
        %2666 = vmin.xlane.f32.xlu0 %v2665
        %v2667 = vpop.xlane.xlu0 %2666
        %v2668 = vcvt.f32.s32 %v2667
        %v2669 = vcvt.f32.s32 %v2663
        %v2670 = vshll.u32 %v2669, 16
        %v2671 = vadd.s32 %v2670, %v2668
        %v2672 = vand.u32 %v2500, 65535
        %v2673 = vshra.s32 %v2500, 16
        %v2674 = vcvt.s32.f32 %v2672
        %v2675 = vcvt.s32.f32 %v2673
        %2676 = vmin.xlane.f32.xlu0 %v2675
        %v2677 = vpop.xlane.xlu0 %2676
        %vm2678 = vcmp.eq.f32.partialorder %v2675, %v2677
        %v2679 = vsel %vm2678, %v2674, inf
        %2680 = vmin.xlane.f32.xlu0 %v2679
        %v2681 = vpop.xlane.xlu0 %2680
        %v2682 = vcvt.f32.s32 %v2681
        %v2683 = vcvt.f32.s32 %v2677
        %v2684 = vshll.u32 %v2683, 16
        %v2685 = vadd.s32 %v2684, %v2682
        %v2686 = vand.u32 %v2501, 65535
        %v2687 = vshra.s32 %v2501, 16
        %v2688 = vcvt.s32.f32 %v2686
        %v2689 = vcvt.s32.f32 %v2687
        %2690 = vmin.xlane.f32.xlu0 %v2689
        %v2691 = vpop.xlane.xlu0 %2690
        %vm2692 = vcmp.eq.f32.partialorder %v2689, %v2691
        %v2693 = vsel %vm2692, %v2688, inf
        %2694 = vmin.xlane.f32.xlu0 %v2693
        %v2695 = vpop.xlane.xlu0 %2694
        %v2696 = vcvt.f32.s32 %v2695
        %v2697 = vcvt.f32.s32 %v2691
        %v2698 = vshll.u32 %v2697, 16
        %v2699 = vadd.s32 %v2698, %v2696
        %v2700 = vand.u32 %v2502, 65535
        %v2701 = vshra.s32 %v2502, 16
        %v2702 = vcvt.s32.f32 %v2700
        %v2703 = vcvt.s32.f32 %v2701
        %2704 = vmin.xlane.f32.xlu0 %v2703
        %v2705 = vpop.xlane.xlu0 %2704
        %vm2706 = vcmp.eq.f32.partialorder %v2703, %v2705
        %v2707 = vsel %vm2706, %v2702, inf
        %2708 = vmin.xlane.f32.xlu0 %v2707
        %v2709 = vpop.xlane.xlu0 %2708
        %v2710 = vcvt.f32.s32 %v2709
        %v2711 = vcvt.f32.s32 %v2705
        %v2712 = vshll.u32 %v2711, 16
        %v2713 = vadd.s32 %v2712, %v2710
        %v2714 = vand.u32 %v2503, 65535
        %v2715 = vshra.s32 %v2503, 16
        %v2716 = vcvt.s32.f32 %v2714
        %v2717 = vcvt.s32.f32 %v2715
        %2718 = vmin.xlane.f32.xlu0 %v2717
        %v2719 = vpop.xlane.xlu0 %2718
        %vm2720 = vcmp.eq.f32.partialorder %v2717, %v2719
        %v2721 = vsel %vm2720, %v2716, inf
        %2722 = vmin.xlane.f32.xlu0 %v2721
        %v2723 = vpop.xlane.xlu0 %2722
        %v2724 = vcvt.f32.s32 %v2723
        %v2725 = vcvt.f32.s32 %v2719
        %v2726 = vshll.u32 %v2725, 16
        %v2727 = vadd.s32 %v2726, %v2724
        %vm2728 = vcmp.eq.s32.totalorder %v1380, %v2517
        %vm2729 = vcmp.eq.s32.totalorder %v1380, %v2531
        %vm2730 = vcmp.eq.s32.totalorder %v1380, %v2545
        %vm2731 = vcmp.eq.s32.totalorder %v1380, %v2559
        %vm2732 = vcmp.eq.s32.totalorder %v1380, %v2573
        %vm2733 = vcmp.eq.s32.totalorder %v1380, %v2587
        %vm2734 = vcmp.eq.s32.totalorder %v1380, %v2601
        %vm2735 = vcmp.eq.s32.totalorder %v1380, %v2615
        %vm2736 = vcmp.eq.s32.totalorder %v1380, %v2629
        %vm2737 = vcmp.eq.s32.totalorder %v1380, %v2643
        %vm2738 = vcmp.eq.s32.totalorder %v1380, %v2657
        %vm2739 = vcmp.eq.s32.totalorder %v1380, %v2671
        %vm2740 = vcmp.eq.s32.totalorder %v1380, %v2685
        %vm2741 = vcmp.eq.s32.totalorder %v1380, %v2699
        %vm2742 = vcmp.eq.s32.totalorder %v1380, %v2713
        %vm2743 = vcmp.eq.s32.totalorder %v1380, %v2727
        %vm2744 = vmor %vm2408, %vm2728
        %vm2745 = vmor %vm2409, %vm2729
        %vm2746 = vmor %vm2410, %vm2730
        %vm2747 = vmor %vm2411, %vm2731
        %vm2748 = vmor %vm2412, %vm2732
        %vm2749 = vmor %vm2413, %vm2733
        %vm2750 = vmor %vm2414, %vm2734
        %vm2751 = vmor %vm2415, %vm2735
        %vm2752 = vmor %vm2416, %vm2736
        %vm2753 = vmor %vm2417, %vm2737
        %vm2754 = vmor %vm2418, %vm2738
        %vm2755 = vmor %vm2419, %vm2739
        %vm2756 = vmor %vm2420, %vm2740
        %vm2757 = vmor %vm2421, %vm2741
        %vm2758 = vmor %vm2422, %vm2742
        %vm2759 = vmor %vm2423, %vm2743
        %v2760 = vsel %vm2744, %v1363, 0.0
        %v2761 = vsel %vm2745, %v1364, 0.0
        %v2762 = vsel %vm2746, %v1365, 0.0
        %v2763 = vsel %vm2747, %v1366, 0.0
        %v2764 = vsel %vm2748, %v1367, 0.0
        %v2765 = vsel %vm2749, %v1368, 0.0
        %v2766 = vsel %vm2750, %v1369, 0.0
        %v2767 = vsel %vm2751, %v1370, 0.0
        %v2768 = vsel %vm2752, %v1371, 0.0
        %v2769 = vsel %vm2753, %v1372, 0.0
        %v2770 = vsel %vm2754, %v1373, 0.0
        %v2771 = vsel %vm2755, %v1374, 0.0
        %v2772 = vsel %vm2756, %v1375, 0.0
        %v2773 = vsel %vm2757, %v1376, 0.0
        %v2774 = vsel %vm2758, %v1377, 0.0
        %v2775 = vsel %vm2759, %v1378, 0.0
        %2776 = vadd.xlane.f32.xlu0 %v2760
        %v2777 = vpop.xlane.xlu0 %2776
        %2778 = vadd.xlane.f32.xlu0 %v2761
        %v2779 = vpop.xlane.xlu0 %2778
        %2780 = vadd.xlane.f32.xlu0 %v2762
        %v2781 = vpop.xlane.xlu0 %2780
        %2782 = vadd.xlane.f32.xlu0 %v2763
        %v2783 = vpop.xlane.xlu0 %2782
        %2784 = vadd.xlane.f32.xlu0 %v2764
        %v2785 = vpop.xlane.xlu0 %2784
        %2786 = vadd.xlane.f32.xlu0 %v2765
        %v2787 = vpop.xlane.xlu0 %2786
        %2788 = vadd.xlane.f32.xlu0 %v2766
        %v2789 = vpop.xlane.xlu0 %2788
        %2790 = vadd.xlane.f32.xlu0 %v2767
        %v2791 = vpop.xlane.xlu0 %2790
        %2792 = vadd.xlane.f32.xlu0 %v2768
        %v2793 = vpop.xlane.xlu0 %2792
        %2794 = vadd.xlane.f32.xlu0 %v2769
        %v2795 = vpop.xlane.xlu0 %2794
        %2796 = vadd.xlane.f32.xlu0 %v2770
        %v2797 = vpop.xlane.xlu0 %2796
        %2798 = vadd.xlane.f32.xlu0 %v2771
        %v2799 = vpop.xlane.xlu0 %2798
        %2800 = vadd.xlane.f32.xlu0 %v2772
        %v2801 = vpop.xlane.xlu0 %2800
        %2802 = vadd.xlane.f32.xlu0 %v2773
        %v2803 = vpop.xlane.xlu0 %2802
        %2804 = vadd.xlane.f32.xlu0 %v2774
        %v2805 = vpop.xlane.xlu0 %2804
        %2806 = vadd.xlane.f32.xlu0 %v2775
        %v2807 = vpop.xlane.xlu0 %2806
        %v2824 = vlaneseq
        %v2825 = vshrl.u32 %v2824, 7
        %v2826 = vsub.s32 %v1380, %v2825
        %v2827 = vrot.slane %v2777, %v2826
        %v2828 = vadd.s32 %v1380, 4294967288
        %v2829 = vlaneseq
        %v2830 = vshrl.u32 %v2829, 7
        %v2831 = vsub.s32 %v2828, %v2830
        %v2832 = vrot.slane %v2779, %v2831
        %vm2833 = vcmask 130112
        %v2834 = vsel %vm2833, %v2832, %v2827
        %v2835 = vadd.s32 %v1380, 4294967280
        %v2836 = vlaneseq
        %v2837 = vshrl.u32 %v2836, 7
        %v2838 = vsub.s32 %v2835, %v2837
        %v2839 = vrot.slane %v2781, %v2838
        %vm2840 = vcmask 195712
        %v2841 = vsel %vm2840, %v2839, %v2834
        %v2842 = vadd.s32 %v1380, 4294967272
        %v2843 = vlaneseq
        %v2844 = vshrl.u32 %v2843, 7
        %v2845 = vsub.s32 %v2842, %v2844
        %v2846 = vrot.slane %v2783, %v2845
        %vm2847 = vcmask 261312
        %v2848 = vsel %vm2847, %v2846, %v2841
        %v2849 = vadd.s32 %v1380, 4294967264
        %v2850 = vlaneseq
        %v2851 = vshrl.u32 %v2850, 7
        %v2852 = vsub.s32 %v2849, %v2851
        %v2853 = vrot.slane %v2785, %v2852
        %vm2854 = vcmask 326912
        %v2855 = vsel %vm2854, %v2853, %v2848
        %v2856 = vadd.s32 %v1380, 4294967256
        %v2857 = vlaneseq
        %v2858 = vshrl.u32 %v2857, 7
        %v2859 = vsub.s32 %v2856, %v2858
        %v2860 = vrot.slane %v2787, %v2859
        %vm2861 = vcmask 392512
        %v2862 = vsel %vm2861, %v2860, %v2855
        %v2863 = vadd.s32 %v1380, 4294967248
        %v2864 = vlaneseq
        %v2865 = vshrl.u32 %v2864, 7
        %v2866 = vsub.s32 %v2863, %v2865
        %v2867 = vrot.slane %v2789, %v2866
        %vm2868 = vcmask 458112
        %v2869 = vsel %vm2868, %v2867, %v2862
        %v2870 = vadd.s32 %v1380, 4294967240
        %v2871 = vlaneseq
        %v2872 = vshrl.u32 %v2871, 7
        %v2873 = vsub.s32 %v2870, %v2872
        %v2874 = vrot.slane %v2791, %v2873
        %vm2875 = vcmask 523712
        %v2876 = vsel %vm2875, %v2874, %v2869
        %v2877 = vadd.s32 %v1380, 4294967232
        %v2878 = vlaneseq
        %v2879 = vshrl.u32 %v2878, 7
        %v2880 = vsub.s32 %v2877, %v2879
        %v2881 = vrot.slane %v2793, %v2880
        %vm2882 = vcmask 589312
        %v2883 = vsel %vm2882, %v2881, %v2876
        %v2884 = vadd.s32 %v1380, 4294967224
        %v2885 = vlaneseq
        %v2886 = vshrl.u32 %v2885, 7
        %v2887 = vsub.s32 %v2884, %v2886
        %v2888 = vrot.slane %v2795, %v2887
        %vm2889 = vcmask 654912
        %v2890 = vsel %vm2889, %v2888, %v2883
        %v2891 = vadd.s32 %v1380, 4294967216
        %v2892 = vlaneseq
        %v2893 = vshrl.u32 %v2892, 7
        %v2894 = vsub.s32 %v2891, %v2893
        %v2895 = vrot.slane %v2797, %v2894
        %vm2896 = vcmask 720512
        %v2897 = vsel %vm2896, %v2895, %v2890
        %v2898 = vadd.s32 %v1380, 4294967208
        %v2899 = vlaneseq
        %v2900 = vshrl.u32 %v2899, 7
        %v2901 = vsub.s32 %v2898, %v2900
        %v2902 = vrot.slane %v2799, %v2901
        %vm2903 = vcmask 786112
        %v2904 = vsel %vm2903, %v2902, %v2897
        %v2905 = vadd.s32 %v1380, 4294967200
        %v2906 = vlaneseq
        %v2907 = vshrl.u32 %v2906, 7
        %v2908 = vsub.s32 %v2905, %v2907
        %v2909 = vrot.slane %v2801, %v2908
        %vm2910 = vcmask 851712
        %v2911 = vsel %vm2910, %v2909, %v2904
        %v2912 = vadd.s32 %v1380, 4294967192
        %v2913 = vlaneseq
        %v2914 = vshrl.u32 %v2913, 7
        %v2915 = vsub.s32 %v2912, %v2914
        %v2916 = vrot.slane %v2803, %v2915
        %vm2917 = vcmask 917312
        %v2918 = vsel %vm2917, %v2916, %v2911
        %v2919 = vadd.s32 %v1380, 4294967184
        %v2920 = vlaneseq
        %v2921 = vshrl.u32 %v2920, 7
        %v2922 = vsub.s32 %v2919, %v2921
        %v2923 = vrot.slane %v2805, %v2922
        %vm2924 = vcmask 982912
        %v2925 = vsel %vm2924, %v2923, %v2918
        %v2926 = vadd.s32 %v1380, 4294967176
        %v2927 = vlaneseq
        %v2928 = vshrl.u32 %v2927, 7
        %v2929 = vsub.s32 %v2926, %v2928
        %v2930 = vrot.slane %v2807, %v2929
        %vm2931 = vcmask 1048512
        %v2932 = vsel %vm2931, %v2930, %v2925
        %2934 = vst [vmem:[%s342] sm:$0x1] %v2932
        %s2935 = sand.u32 %s202, 1
        %s2936 = scalar_lea.sflag [#allocation3], %s2935
        %s2937 = sand.u32 %s202, 1
        %s2938 = scalar_lea.vmem [#allocation2], %s2937
        // Predicated region
        $region45: #{tpu_custom_call.1} parent=43 // pred_check
          %p2939 = pneg %p212
        $region46: #{tpu_custom_call.1} parent=43 // pred_check_branch
          %2941 = sbr.rel (%p2939) target = $region48
        $region47: #{tpu_custom_call.1} parent=43 // pred_region
          %s2943 = ssub.s32 16, 16
          %2944 = vsyncadd %s2936, %s2943
          %s2945 = sadd.s32 %s24, %s25
          %s2946 = smul.addr %s2945, 16
          %s2947 = scalar_lea.hbm %s6, %s2946
          %s2949 = sshll.u32 %s2938, 4
          %s2950 = int_to_ptr.vmem [resolvable:$true] %s2949
          %2952 = dma.vmem_to_hbm [thread:$0]  %s2950, 16, %s2947, %s2936
        $region48: #{tpu_custom_call.1} parent=43 // pred_fallthru
          _
      $region44: #{tpu_custom_call.1} parent=5 // pred_fallthru
        _
      %p2953 = scmp.le.s32.totalorder 2, %s15
      // Predicated region
      $region49: #{tpu_custom_call.1} parent=5 // pred_check
        %p2954 = pneg %p2953
      $region50: #{tpu_custom_call.1} parent=5 // pred_check_branch
        %2956 = sbr.rel (%p2954) target = $region52
      $region51: #{tpu_custom_call.1} parent=5 // pred_region
        %s2957 = ssub.s32 %s15, 2
        // Predicated region
        $region53: #{tpu_custom_call.1} parent=51 // pred_check
          %p2958 = pneg %p218
        $region54: #{tpu_custom_call.1} parent=51 // pred_check_branch
          %2960 = sbr.rel (%p2958) target = $region56
        $region55: #{tpu_custom_call.1} parent=51 // pred_region
          %s2961 = sand.u32 %s203, 1
          %s2962 = scalar_lea.sflag [#allocation3], %s2961
          %s2963 = sand.u32 %s203, 1
          %s2964 = scalar_lea.vmem [#allocation2], %s2963
          %2965 = dma.done %s2962, 16
        $region56: #{tpu_custom_call.1} parent=51 // pred_fallthru
          _
      $region52: #{tpu_custom_call.1} parent=5 // pred_fallthru
        _
    $region6: #{tpu_custom_call.1} parent=1 // loop_footer
      %s19 = sadd.s32 1, %s15
    $region7: #{tpu_custom_call.1} parent=1 // loop_footer_branch
      %14 = sbr.rel target = $region3
    $region8: #{tpu_custom_call.1} parent=1 // loop_exit
      _
    %2966 = vsyncpa [#allocation3], 1
    %s2967 = scalar_lea.sflag [#allocation3], 1
    %2968 = vsyncpa %s2967, 1

</llo_original>
